<compile_context>
chip_gen: v7x
topology: tpu7x:2x2x1
jax: 0.10.0
libtpu: 0.0.40
codegen_flags: <defaults>
</compile_context>

<pallas_src>
import functools

import jax
import jax.numpy as jnp
from jax.experimental import pallas as pl
from jax.experimental.pallas import tpu as pltpu


def _round_up(x, m):
    return (x + m - 1) // m * m


def _fusion_kernel(img_ref, pts_ref, vecs_ref, wfc1_ref, wpts_ref,
                   wia_ref, wfi_ref, out_ref, *, bfc3):
    ic = img_ref.shape[1]
    pc = pts_ref.shape[1]
    outp_pad = out_ref.shape[1]
    W = wpts_ref.shape[1]

    img = img_ref[...]                       # [TN, ic]  bf16
    pts = pts_ref[...]                       # [TN, pc]  bf16

    # packed per-channel vectors (f32, one row each)
    bnic_s = vecs_ref[0:1, :ic]
    bnic_b = vecs_ref[1:2, :ic]
    bias12 = vecs_ref[2:3, :W]               # bfc1 + bfc2, in the rc window
    wfc3 = vecs_ref[3:4, :W]                 # fc3 weights, in the rc window
    bia = vecs_ref[4:5, :pc]
    bfu = vecs_ref[5:6, :outp_pad]

    # --- IA_Layer.fc1 : BatchNorm1d(ic) (folded affine) -> ReLU (f32 VPU) ---
    xn = jnp.maximum(img.astype(jnp.float32) * bnic_s + bnic_b, 0.0)

    # --- one MXU pass over pts serves both halves ---------------------------
    #   columns [0, outp)           -> point half of the fusion conv (wfp)
    #   columns [rc_off, rc_off+rc) -> IA fc2 output (rp)
    pts_both = jnp.dot(pts, wpts_ref[...],
                       preferred_element_type=jnp.float32)          # [TN, W]

    # --- IA_Layer.fc1 Linear(ic, rc) (zero outside the rc window) -----------
    ri = jnp.dot(xn.astype(jnp.bfloat16), wfc1_ref[...],
                 preferred_element_type=jnp.float32)                 # [TN, W]

    # --- att = sigmoid(fc3(tanh(ri + rp))) ----------------------------------
    # Lanes outside the rc window carry fused_pts values, but wfc3 is exactly
    # zero there, so they drop out of the reduction.
    t = jnp.tanh(ri + pts_both + bias12)
    att = jax.nn.sigmoid(
        jnp.sum(t * wfc3, axis=-1, keepdims=True) + bfc3)            # [TN, 1]

    # --- IA_Layer.conv1 : Conv1d(ic, pc, 1) + BN(pc) + ReLU (BN folded) -----
    img_new = jnp.maximum(
        jnp.dot(img, wia_ref[...], preferred_element_type=jnp.float32) + bia,
        0.0)                                                          # [TN, pc]

    # --- fusion conv, image half: (img_new * att) @ Wfi == att*(img_new@Wfi)
    fused_img = att * jnp.dot(img_new.astype(jnp.bfloat16), wfi_ref[...],
                              preferred_element_type=jnp.float32)     # [TN, outp_pad]

    # point half of the fusion conv is already in pts_both[:, :outp_pad];
    # padded output lanes (>= outp) are garbage and sliced off by the wrapper.
    out_ref[...] = jnp.maximum(
        pts_both[:, :outp_pad] + fused_img + bfu, 0.0).astype(out_ref.dtype)


def atten_fusion_conv(point_features, img_features, params, *,
                      tile_n=2048, out_dtype=jnp.bfloat16, stream_buffers=None):
    """point_features: [N, pc], img_features: [N, ic] -> [N, outplanes]."""
    N, pc = point_features.shape
    Ni, ic = img_features.shape
    assert Ni == N
    p = params
    outp = p["outp"]
    outp_pad = p["wfi"].shape[1]
    W = p["wpts"].shape[1]

    # Point tile: as large as possible (big DMA bursts, amortize ~0.35us/step
    # pipeline overhead) but keep >= 4 grid steps so prefetch/writeback
    # overlaps and v7x's two TensorCores each get multiple steps.
    tile = max(8, _round_up(min(tile_n, (N + 3) // 4), 8))
    grid = (N + tile - 1) // tile        # ragged last block masked by Mosaic

    mode = pl.Buffered(stream_buffers) if stream_buffers else None

    def row_spec(c):
        if mode is None:
            return pl.BlockSpec((tile, c), lambda i: (i, 0))
        return pl.BlockSpec((tile, c), lambda i: (i, 0), pipeline_mode=mode)

    def full_spec(shape):
        ndim = len(shape)
        return pl.BlockSpec(shape, lambda i: (0,) * ndim)

    in_specs = [
        row_spec(ic),                 # img  (streamed)
        row_spec(pc),                 # pts  (streamed)
        full_spec(p["vecs"].shape),   # packed scale/shift/bias/fc3 vectors
        full_spec(p["wfc1"].shape),   # W fc1                [ic, W]
        full_spec(p["wpts"].shape),   # [wfp | wfc2] packed  [pc, W]
        full_spec(p["wia"].shape),    # W IA conv (BN folded)[ic, pc]
        full_spec(p["wfi"].shape),    # W fusion image half  [pc, outp_pad]
    ]

    ibytes = img_features.dtype.itemsize
    pbytes = point_features.dtype.itemsize
    obytes = jnp.dtype(out_dtype).itemsize
    weight_names = ("vecs", "wfc1", "wpts", "wia", "wfi")
    weight_bytes = sum(int(p[k].size) * p[k].dtype.itemsize for k in weight_names)

    # Right-sized VMEM budget: n-buffered streamed tiles + weights + headroom.
    nbuf = stream_buffers or 2
    stream_bytes = tile * (ic * ibytes + pc * pbytes + outp_pad * obytes)
    vmem_limit = int(min(nbuf * stream_bytes + 2 * weight_bytes + (8 << 20),
                         48 << 20))

    cost = pl.CostEstimate(
        flops=int(2 * N * (ic * W + pc * W + ic * pc + pc * outp_pad)),
        transcendentals=int(N * (W + 1)),
        bytes_accessed=int(N * (ic * ibytes + pc * pbytes + outp_pad * obytes)
                           + weight_bytes))

    kernel = functools.partial(_fusion_kernel, bfc3=p["bfc3"])

    out = pl.pallas_call(
        kernel,
        out_shape=jax.ShapeDtypeStruct((N, outp_pad), out_dtype),
        grid_spec=pltpu.PrefetchScalarGridSpec(
            num_scalar_prefetch=0,
            grid=(grid,),
            in_specs=in_specs,
            out_specs=row_spec(outp_pad),
        ),
        compiler_params=pltpu.CompilerParams(
            dimension_semantics=("parallel",),
            vmem_limit_bytes=vmem_limit),
        cost_estimate=cost,
    )(img_features, point_features,
      p["vecs"], p["wfc1"], p["wpts"], p["wia"], p["wfi"])

    return out if outp == outp_pad else out[:, :outp]


def make_params(key, ic, pc, outp):
    """Deterministic synthetic parameters (eval-mode BNs folded, packed)."""
    rc = pc // 4
    outp_pad = _round_up(outp, 128)
    # Hide the rc columns in the outp padding tail when they fit; otherwise
    # append a lane-aligned rc slab after the fusion-conv point half.
    rc_off = outp if (outp_pad - outp) >= rc else outp_pad
    W = max(outp_pad, _round_up(rc_off + rc, 128))
    Vw = _round_up(max(W, ic, pc), 128)
    eps = 1e-5
    ks = jax.random.split(key, 16)
    nrm = lambda k, s, sc=0.1: sc * jax.random.normal(k, s, jnp.float32)

    # --- IA_Layer.fc1 : BatchNorm1d(ic) folded to scale/shift ---------------
    g_ic = 1.0 + nrm(ks[0], (ic,)); b_ic = nrm(ks[1], (ic,))
    m_ic = nrm(ks[2], (ic,));       v_ic = 1.0 + 0.1 * jax.random.uniform(ks[3], (ic,))
    s_ic = g_ic / jnp.sqrt(v_ic + eps)
    bnic_s = s_ic
    bnic_b = b_ic - m_ic * s_ic

    wfc1 = nrm(ks[4], (ic, rc)); bfc1 = nrm(ks[5], (rc,))
    wfc2 = nrm(ks[6], (pc, rc)); bfc2 = nrm(ks[7], (rc,))
    wfc3 = nrm(ks[8], (rc,));    bfc3 = float(nrm(ks[9], (1,))[0])

    # --- IA_Layer.conv1 : Conv1d(ic, pc, 1) + BN(pc), folded ----------------
    w_ia = nrm(ks[10], (ic, pc)); b_ia = nrm(ks[11], (pc,))
    g_pc = 1.0 + nrm(ks[12], (pc,)); b_pc = nrm(ks[13], (pc,))
    m_pc = jnp.zeros((pc,)); v_pc = jnp.ones((pc,))
    s_pc = g_pc / jnp.sqrt(v_pc + eps)
    wia = w_ia * s_pc[None, :]
    bia = (b_ia - m_pc) * s_pc + b_pc

    # --- Atten_Fusion_Conv.conv1 : Conv1d(2*pc, outp, 1) + BN(outp) ---------
    w_fu = nrm(ks[14], (2 * pc, outp)); b_fu = nrm(ks[15], (outp,))
    s_o = jnp.ones((outp,)) / jnp.sqrt(jnp.ones((outp,)) + eps)
    w_fu = w_fu * s_o[None, :]
    bfu = b_fu * s_o
    wfp = w_fu[:pc, :]      # top half acts on point features
    wfi = w_fu[pc:, :]      # bottom half acts on attended image features

    # --- pack / pad for the kernel ------------------------------------------
    wpts = (jnp.zeros((pc, W), jnp.float32)
            .at[:, :outp].set(wfp)
            .at[:, rc_off:rc_off + rc].set(wfc2))
    wfc1_p = jnp.zeros((ic, W), jnp.float32).at[:, rc_off:rc_off + rc].set(wfc1)
    wfi_p = jnp.zeros((pc, outp_pad), jnp.float32).at[:, :outp].set(wfi)

    vecs = (jnp.zeros((8, Vw), jnp.float32)
            .at[0, :ic].set(bnic_s)
            .at[1, :ic].set(bnic_b)
            .at[2, rc_off:rc_off + rc].set(bfc1 + bfc2)
            .at[3, rc_off:rc_off + rc].set(wfc3)
            .at[4, :pc].set(bia)
            .at[5, :outp].set(bfu))

    bf16 = lambda a: a.astype(jnp.bfloat16)            # MXU operands in bf16
    return dict(vecs=vecs, wfc1=bf16(wfc1_p), wpts=bf16(wpts),
                wia=bf16(wia), wfi=bf16(wfi_p), bfc3=bfc3, outp=outp)


def reference(point_features, img_features, p):
    """Pure-JAX reference (f32 activations, bf16-rounded weights)."""
    outp = p["outp"]
    outp_pad = p["wfi"].shape[1]
    W = p["wpts"].shape[1]
    ic = img_features.shape[1]
    pc = point_features.shape[1]
    f32 = lambda a: a.astype(jnp.float32)
    img = f32(img_features); pts = f32(point_features)
    vecs = p["vecs"]
    bnic_s, bnic_b = vecs[0, :ic], vecs[1, :ic]
    bias12, wfc3 = vecs[2, :W], vecs[3, :W]
    bia, bfu = vecs[4, :pc], vecs[5, :outp_pad]

    xn = jnp.maximum(img * bnic_s + bnic_b, 0.0)
    pts_both = pts @ f32(p["wpts"])
    ri = xn @ f32(p["wfc1"])
    t = jnp.tanh(ri + pts_both + bias12)
    att = jax.nn.sigmoid(jnp.sum(t * wfc3, -1, keepdims=True) + p["bfc3"])
    img_new = jnp.maximum(img @ f32(p["wia"]) + bia, 0.0)
    fused = pts_both[:, :outp_pad] + att * (img_new @ f32(p["wfi"])) + bfu
    return jnp.maximum(fused, 0.0)[:, :outp]


if __name__ == "__main__":
    # smallest real config of the module: inplanes_I=64, inplanes_P=96, outplanes=96
    ic, pc, outp = 64, 96, 96
    N = 1000                          # arbitrary point count (exercises the ragged last block)
    key = jax.random.PRNGKey(0)
    k_img, k_pts, k_par = jax.random.split(key, 3)

    img_f32 = jax.random.normal(k_img, (N, ic), jnp.float32)    # [N, C_img]
    pts_f32 = jax.random.normal(k_pts, (N, pc), jnp.float32)    # [N, C_pt]
    params = make_params(k_par, ic, pc, outp)

    # bandwidth-bound kernel: stream activations in bf16 (inputs and output)
    img_features = img_f32.astype(jnp.bfloat16)
    point_features = pts_f32.astype(jnp.bfloat16)

    out = atten_fusion_conv(point_features, img_features, params, tile_n=2048)
    out = jax.block_until_ready(out)

    ref = reference(point_features, img_features, params)
    assert out.shape == (N, outp)
    assert out.dtype == jnp.bfloat16
    # bf16 streamed activations + bf16 MXU operands (f32 accumulation)
    # => loose tolerance vs the f32-activation reference
    assert jnp.allclose(out.astype(jnp.float32), ref, atol=5e-2, rtol=5e-2), \
        "mismatch vs reference"

    print("KERNEL_OK")
</pallas_src>

<mosaic_0001>
module attributes {stable_mosaic.version = 11 : i64} {
  func.func @_fusion_kernel(%arg0: i32, %arg1: memref<256x64xbf16, #tpu.memory_space<vmem>>, %arg2: memref<256x96xbf16, #tpu.memory_space<vmem>>, %arg3: memref<8x128xf32, #tpu.memory_space<vmem>>, %arg4: memref<64x128xbf16, #tpu.memory_space<vmem>>, %arg5: memref<96x128xbf16, #tpu.memory_space<vmem>>, %arg6: memref<64x96xbf16, #tpu.memory_space<vmem>>, %arg7: memref<96x128xbf16, #tpu.memory_space<vmem>>, %arg8: memref<256x128xbf16, #tpu.memory_space<vmem>>) attributes {dimension_semantics = [#tpu.dimension_semantics<parallel>], iteration_bounds = array<i64: 4>, scalar_prefetch = 0 : i64, scratch_operands = 0 : i64, tpu.core_type = #tpu.core_type<tc>, window_params = [{transform_indices = @transform_0, window_bounds = array<i64: 256, 64>}, {transform_indices = @transform_1, window_bounds = array<i64: 256, 96>}, {pipeline_mode = #tpu.pipeline_mode<synchronous>, transform_indices = @transform_2, window_bounds = array<i64: 8, 128>}, {pipeline_mode = #tpu.pipeline_mode<synchronous>, transform_indices = @transform_3, window_bounds = array<i64: 64, 128>}, {pipeline_mode = #tpu.pipeline_mode<synchronous>, transform_indices = @transform_4, window_bounds = array<i64: 96, 128>}, {pipeline_mode = #tpu.pipeline_mode<synchronous>, transform_indices = @transform_5, window_bounds = array<i64: 64, 96>}, {pipeline_mode = #tpu.pipeline_mode<synchronous>, transform_indices = @transform_6, window_bounds = array<i64: 96, 128>}, {transform_indices = @transform_7, window_bounds = array<i64: 256, 128>}]} {
    %c0 = arith.constant 0 : index
    %c0_0 = arith.constant 0 : index
    %0 = vector.load %arg1[%c0, %c0_0] : memref<256x64xbf16, #tpu.memory_space<vmem>>, vector<256x64xbf16>
    %c0_1 = arith.constant 0 : index
    %c0_2 = arith.constant 0 : index
    %1 = vector.load %arg2[%c0_1, %c0_2] : memref<256x96xbf16, #tpu.memory_space<vmem>>, vector<256x96xbf16>
    %c0_3 = arith.constant 0 : index
    %c0_4 = arith.constant 0 : index
    %2 = vector.load %arg3[%c0_3, %c0_4] : memref<8x128xf32, #tpu.memory_space<vmem>>, vector<1x64xf32>
    %c1 = arith.constant 1 : index
    %c0_5 = arith.constant 0 : index
    %3 = vector.load %arg3[%c1, %c0_5] : memref<8x128xf32, #tpu.memory_space<vmem>>, vector<1x64xf32>
    %c2 = arith.constant 2 : index
    %c0_6 = arith.constant 0 : index
    %4 = vector.load %arg3[%c2, %c0_6] : memref<8x128xf32, #tpu.memory_space<vmem>>, vector<1x128xf32>
    %c3 = arith.constant 3 : index
    %c0_7 = arith.constant 0 : index
    %5 = vector.load %arg3[%c3, %c0_7] : memref<8x128xf32, #tpu.memory_space<vmem>>, vector<1x128xf32>
    %c4 = arith.constant 4 : index
    %c0_8 = arith.constant 0 : index
    %6 = vector.load %arg3[%c4, %c0_8] : memref<8x128xf32, #tpu.memory_space<vmem>>, vector<1x96xf32>
    %c5 = arith.constant 5 : index
    %c0_9 = arith.constant 0 : index
    %7 = vector.load %arg3[%c5, %c0_9] : memref<8x128xf32, #tpu.memory_space<vmem>>, vector<1x128xf32>
    %8 = arith.extf %0 : vector<256x64xbf16> to vector<256x64xf32>
    %9 = vector.broadcast %2 : vector<1x64xf32> to vector<256x64xf32>
    %10 = arith.mulf %8, %9 : vector<256x64xf32>
    %11 = vector.broadcast %3 : vector<1x64xf32> to vector<256x64xf32>
    %12 = arith.addf %10, %11 : vector<256x64xf32>
    %cst = arith.constant 0.000000e+00 : f32
    %13 = vector.broadcast %cst : f32 to vector<256x64xf32>
    %14 = arith.maximumf %12, %13 : vector<256x64xf32>
    %c0_10 = arith.constant 0 : index
    %c0_11 = arith.constant 0 : index
    %15 = vector.load %arg5[%c0_10, %c0_11] : memref<96x128xbf16, #tpu.memory_space<vmem>>, vector<96x128xbf16>
    %cst_12 = arith.constant dense<0.000000e+00> : vector<256x128xf32>
    %16 = tpu.matmul %1, %15, %cst_12 {dimension_numbers = #tpu.dot_dimension_numbers<[1], [0], [0], [1], [0, 0, 1, 1], [], []>} : vector<256x96xbf16>, vector<96x128xbf16>, vector<256x128xf32> -> vector<256x128xf32>
    %17 = arith.truncf %14 : vector<256x64xf32> to vector<256x64xbf16>
    %c0_13 = arith.constant 0 : index
    %c0_14 = arith.constant 0 : index
    %18 = vector.load %arg4[%c0_13, %c0_14] : memref<64x128xbf16, #tpu.memory_space<vmem>>, vector<64x128xbf16>
    %cst_15 = arith.constant dense<0.000000e+00> : vector<256x128xf32>
    %19 = tpu.matmul %17, %18, %cst_15 {dimension_numbers = #tpu.dot_dimension_numbers<[1], [0], [0], [1], [0, 0, 1, 1], [], []>} : vector<256x64xbf16>, vector<64x128xbf16>, vector<256x128xf32> -> vector<256x128xf32>
    %20 = arith.addf %19, %16 : vector<256x128xf32>
    %21 = vector.broadcast %4 : vector<1x128xf32> to vector<256x128xf32>
    %22 = arith.addf %20, %21 : vector<256x128xf32>
    %23 = math.tanh %22 : vector<256x128xf32>
    %24 = vector.broadcast %5 : vector<1x128xf32> to vector<256x128xf32>
    %25 = arith.mulf %23, %24 : vector<256x128xf32>
    %cst_16 = arith.constant dense<0.000000e+00> : vector<256xf32>
    %26 = vector.multi_reduction <add>, %25, %cst_16 [1] : vector<256x128xf32> to vector<256xf32>
    %27 = vector.shape_cast %26 : vector<256xf32> to vector<256x1xf32>
    %cst_17 = arith.constant 0.162456676 : f32
    %28 = vector.broadcast %cst_17 : f32 to vector<256x1xf32>
    %29 = arith.addf %27, %28 : vector<256x1xf32>
    %30 = arith.negf %29 : vector<256x1xf32>
    %31 = math.exp %30 : vector<256x1xf32>
    %cst_18 = arith.constant 1.000000e+00 : f32
    %32 = vector.broadcast %cst_18 : f32 to vector<256x1xf32>
    %33 = arith.addf %32, %31 : vector<256x1xf32>
    %34 = arith.divf %32, %33 : vector<256x1xf32>
    %c0_19 = arith.constant 0 : index
    %c0_20 = arith.constant 0 : index
    %35 = vector.load %arg6[%c0_19, %c0_20] : memref<64x96xbf16, #tpu.memory_space<vmem>>, vector<64x96xbf16>
    %cst_21 = arith.constant dense<0.000000e+00> : vector<256x96xf32>
    %36 = tpu.matmul %0, %35, %cst_21 {dimension_numbers = #tpu.dot_dimension_numbers<[1], [0], [0], [1], [0, 0, 1, 1], [], []>} : vector<256x64xbf16>, vector<64x96xbf16>, vector<256x96xf32> -> vector<256x96xf32>
    %37 = vector.broadcast %6 : vector<1x96xf32> to vector<256x96xf32>
    %38 = arith.addf %36, %37 : vector<256x96xf32>
    %cst_22 = arith.constant 0.000000e+00 : f32
    %39 = vector.broadcast %cst_22 : f32 to vector<256x96xf32>
    %40 = arith.maximumf %38, %39 : vector<256x96xf32>
    %41 = arith.truncf %40 : vector<256x96xf32> to vector<256x96xbf16>
    %c0_23 = arith.constant 0 : index
    %c0_24 = arith.constant 0 : index
    %42 = vector.load %arg7[%c0_23, %c0_24] : memref<96x128xbf16, #tpu.memory_space<vmem>>, vector<96x128xbf16>
    %cst_25 = arith.constant dense<0.000000e+00> : vector<256x128xf32>
    %43 = tpu.matmul %41, %42, %cst_25 {dimension_numbers = #tpu.dot_dimension_numbers<[1], [0], [0], [1], [0, 0, 1, 1], [], []>} : vector<256x96xbf16>, vector<96x128xbf16>, vector<256x128xf32> -> vector<256x128xf32>
    %44 = vector.broadcast %34 : vector<256x1xf32> to vector<256x128xf32>
    %45 = arith.mulf %44, %43 : vector<256x128xf32>
    %46 = arith.addf %16, %45 : vector<256x128xf32>
    %47 = vector.broadcast %7 : vector<1x128xf32> to vector<256x128xf32>
    %48 = arith.addf %46, %47 : vector<256x128xf32>
    %cst_26 = arith.constant 0.000000e+00 : f32
    %49 = vector.broadcast %cst_26 : f32 to vector<256x128xf32>
    %50 = arith.maximumf %48, %49 : vector<256x128xf32>
    %51 = arith.truncf %50 : vector<256x128xf32> to vector<256x128xbf16>
    %c0_27 = arith.constant 0 : index
    %c0_28 = arith.constant 0 : index
    %52 = vector.load %arg8[%c0_27, %c0_28] : memref<256x128xbf16, #tpu.memory_space<vmem>>, vector<256x128xbf16>
    tpu.vector_store %arg8[%c0_27, %c0_28], %51 {strides = array<i32>} : memref<256x128xbf16, #tpu.memory_space<vmem>>, vector<256x128xbf16>,
    return
  }
  func.func @transform_0(%arg0: i32) -> (i32, i32) {
    %c0_i32 = arith.constant 0 : i32
    %c0_i32_0 = arith.constant 0 : i32
    return %arg0, %c0_i32 : i32, i32
  }
  func.func @transform_1(%arg0: i32) -> (i32, i32) {
    %c0_i32 = arith.constant 0 : i32
    %c0_i32_0 = arith.constant 0 : i32
    return %arg0, %c0_i32 : i32, i32
  }
  func.func @transform_2(%arg0: i32) -> (i32, i32) {
    %c0_i32 = arith.constant 0 : i32
    %c0_i32_0 = arith.constant 0 : i32
    %c0_i32_1 = arith.constant 0 : i32
    return %c0_i32, %c0_i32_0 : i32, i32
  }
  func.func @transform_3(%arg0: i32) -> (i32, i32) {
    %c0_i32 = arith.constant 0 : i32
    %c0_i32_0 = arith.constant 0 : i32
    %c0_i32_1 = arith.constant 0 : i32
    return %c0_i32, %c0_i32_0 : i32, i32
  }
  func.func @transform_4(%arg0: i32) -> (i32, i32) {
    %c0_i32 = arith.constant 0 : i32
    %c0_i32_0 = arith.constant 0 : i32
    %c0_i32_1 = arith.constant 0 : i32
    return %c0_i32, %c0_i32_0 : i32, i32
  }
  func.func @transform_5(%arg0: i32) -> (i32, i32) {
    %c0_i32 = arith.constant 0 : i32
    %c0_i32_0 = arith.constant 0 : i32
    %c0_i32_1 = arith.constant 0 : i32
    return %c0_i32, %c0_i32_0 : i32, i32
  }
  func.func @transform_6(%arg0: i32) -> (i32, i32) {
    %c0_i32 = arith.constant 0 : i32
    %c0_i32_0 = arith.constant 0 : i32
    %c0_i32_1 = arith.constant 0 : i32
    return %c0_i32, %c0_i32_0 : i32, i32
  }
  func.func @transform_7(%arg0: i32) -> (i32, i32) {
    %c0_i32 = arith.constant 0 : i32
    %c0_i32_0 = arith.constant 0 : i32
    return %arg0, %c0_i32 : i32, i32
  }
}

</mosaic_0001>

<llo_original>
// kernel: tpu_custom_call.1
$region0: #{tpu_custom_call.1}
  #allocation0 [shape = 'u32[]', space=smem, size = 0x4, offset = 0x4, fixed_abs, tag = 'smem constant byte address 0x4 - core index']
  #allocation1 [shape = 'u32[144,128]{1,0:T(1,128)}', space=vmem, size = 0x12000, scoped, tag = 'internal scratch']
  %s0 = inlined_call_operand.vmem [shape: bf16[1000,64], index: 0, kind: input, shape index: {}]
  %s1 = inlined_call_operand.vmem [shape: bf16[1000,96], index: 1, kind: input, shape index: {}]
  %s2 = inlined_call_operand.vmem [shape: f32[8,128], index: 2, kind: input, shape index: {}]
  %s3 = inlined_call_operand.vmem [shape: bf16[64,128], index: 3, kind: input, shape index: {}]
  %s4 = inlined_call_operand.vmem [shape: bf16[96,128], index: 4, kind: input, shape index: {}]
  %s5 = inlined_call_operand.vmem [shape: bf16[64,96], index: 5, kind: input, shape index: {}]
  %s6 = inlined_call_operand.vmem [shape: bf16[96,128], index: 6, kind: input, shape index: {}]
  %s7 = inlined_call_operand.hbm [shape: bf16[1000,128], index: 7, kind: output, shape index: {}]
  %s8 = sld [smem:[#allocation0]]
  $region61: #{tpu_custom_call.1} parent=0
    _
  %s10 = ssub.s32 1, %s8
  %s11 = scalar_select 0, %s10, %s8
  $region1: #{tpu_custom_call.1} parent=0
    #allocation2 [shape = 'u8[131072]{0}', space=vmem, size = 0x20000, scoped, tag = 'output window, operand 0']
    #allocation3 [shape = 's32[2]{0}', space=sflag, size = 0x8, scoped, tag = 'scoped memory for tpu_custom_call.1']
    %12 = vsyncpa [#allocation3], 0
    %s13 = scalar_lea.sflag [#allocation3], 1
    %14 = vsyncpa %s13, 0
    loop: start=0, step=1, limit=6
    $region2: #{tpu_custom_call.1} parent=1 // loop_pre_header
      _
    $region3: #{tpu_custom_call.1} parent=1 // loop_header
      %s16 = sphi 0, %s20
      %p17 = scmp.ge.s32.totalorder %s16, 6
      %s26 = sphi 0, %s28
      %s29 = sphi 0, %s26
      %s30 = sphi 0, %s29
      %s46 = sphi 0, %s30
      %s52 = sphi 0, %s54
      %s55 = sphi 0, %s52
      %s56 = sphi 0, %s55
      %s72 = sphi 0, %s56
      %s76 = sphi 0, %s76
      %s78 = sphi 0, %s76
      %s79 = sphi 0, %s78
      %s93 = sphi 0, %s79
      %s97 = sphi 0, %s97
      %s99 = sphi 0, %s97
      %s100 = sphi 0, %s99
      %s114 = sphi 0, %s100
      %s118 = sphi 0, %s118
      %s120 = sphi 0, %s118
      %s121 = sphi 0, %s120
      %s135 = sphi 0, %s121
      %s139 = sphi 0, %s139
      %s141 = sphi 0, %s139
      %s142 = sphi 0, %s141
      %s156 = sphi 0, %s142
      %s160 = sphi 0, %s160
      %s162 = sphi 0, %s160
      %s163 = sphi 0, %s162
      %s177 = sphi 0, %s163
      %s183 = sphi 0, %s185
      %s186 = sphi 0, %s183
      %s187 = sphi 0, %s186
      %s203 = sphi 0, %s187
    $region4: #{tpu_custom_call.1} parent=1 // loop_header_branch
      %19 = sbr.rel (%p17) target = $region8
    $region5: #{tpu_custom_call.1} parent=1 // loop_body
      %s21 = ssub.s32 %s16, 1
      %s22 = ssub.s32 %s16, 2
      %s23 = sadd.s32 %s16, 1
      %s24 = ssub.s32 %s16, %s23
      %p25 = scmp.eq.s32.totalorder %s24, 0
      %s27 = sadd.s32 %s26, 1
      %s28 = scalar_select %p25, %s26, %s27
      %p31 = pneg %p25
      %p32 = scmp.eq.s32.totalorder %s16, 3
      %p33 = por %p31, %p32
      %p34 = scmp.ne.s32.totalorder %s26, %s29
      %p35 = scmp.eq.s32.totalorder %s16, 0
      %p36 = por %p34, %p35
      %p37 = scmp.ne.s32.totalorder %s26, %s29
      %p38 = scmp.eq.s32.totalorder %s21, 3
      %p39 = por %p37, %p38
      %p40 = scmp.ne.s32.totalorder %s29, %s30
      %p41 = scmp.eq.s32.totalorder %s21, 0
      %p42 = por %p40, %p41
      %p43 = scmp.ne.s32.totalorder %s29, %s30
      %p44 = scmp.eq.s32.totalorder %s22, 3
      %p45 = por %p43, %p44
      %p47 = scmp.ne.s32.totalorder %s30, %s46
      %p48 = scmp.eq.s32.totalorder %s22, 0
      %p49 = por %p47, %p48
      %s50 = ssub.s32 %s16, %s23
      %p51 = scmp.eq.s32.totalorder %s50, 0
      %s53 = sadd.s32 %s52, 1
      %s54 = scalar_select %p51, %s52, %s53
      %p57 = pneg %p51
      %p58 = scmp.eq.s32.totalorder %s16, 3
      %p59 = por %p57, %p58
      %p60 = scmp.ne.s32.totalorder %s52, %s55
      %p61 = scmp.eq.s32.totalorder %s16, 0
      %p62 = por %p60, %p61
      %p63 = scmp.ne.s32.totalorder %s52, %s55
      %p64 = scmp.eq.s32.totalorder %s21, 3
      %p65 = por %p63, %p64
      %p66 = scmp.ne.s32.totalorder %s55, %s56
      %p67 = scmp.eq.s32.totalorder %s21, 0
      %p68 = por %p66, %p67
      %p69 = scmp.ne.s32.totalorder %s55, %s56
      %p70 = scmp.eq.s32.totalorder %s22, 3
      %p71 = por %p69, %p70
      %p73 = scmp.ne.s32.totalorder %s56, %s72
      %p74 = scmp.eq.s32.totalorder %s22, 0
      %p75 = por %p73, %p74
      %s77 = sadd.s32 %s76, 1
      %p80 = scmp.eq.s32.totalorder %s16, 3
      %p81 = scmp.ne.s32.totalorder %s76, %s78
      %p82 = scmp.eq.s32.totalorder %s16, 0
      %p83 = por %p81, %p82
      %p84 = scmp.ne.s32.totalorder %s76, %s78
      %p85 = scmp.eq.s32.totalorder %s21, 3
      %p86 = por %p84, %p85
      %p87 = scmp.ne.s32.totalorder %s78, %s79
      %p88 = scmp.eq.s32.totalorder %s21, 0
      %p89 = por %p87, %p88
      %p90 = scmp.ne.s32.totalorder %s78, %s79
      %p91 = scmp.eq.s32.totalorder %s22, 3
      %p92 = por %p90, %p91
      %p94 = scmp.ne.s32.totalorder %s79, %s93
      %p95 = scmp.eq.s32.totalorder %s22, 0
      %p96 = por %p94, %p95
      %s98 = sadd.s32 %s97, 1
      %p101 = scmp.eq.s32.totalorder %s16, 3
      %p102 = scmp.ne.s32.totalorder %s97, %s99
      %p103 = scmp.eq.s32.totalorder %s16, 0
      %p104 = por %p102, %p103
      %p105 = scmp.ne.s32.totalorder %s97, %s99
      %p106 = scmp.eq.s32.totalorder %s21, 3
      %p107 = por %p105, %p106
      %p108 = scmp.ne.s32.totalorder %s99, %s100
      %p109 = scmp.eq.s32.totalorder %s21, 0
      %p110 = por %p108, %p109
      %p111 = scmp.ne.s32.totalorder %s99, %s100
      %p112 = scmp.eq.s32.totalorder %s22, 3
      %p113 = por %p111, %p112
      %p115 = scmp.ne.s32.totalorder %s100, %s114
      %p116 = scmp.eq.s32.totalorder %s22, 0
      %p117 = por %p115, %p116
      %s119 = sadd.s32 %s118, 1
      %p122 = scmp.eq.s32.totalorder %s16, 3
      %p123 = scmp.ne.s32.totalorder %s118, %s120
      %p124 = scmp.eq.s32.totalorder %s16, 0
      %p125 = por %p123, %p124
      %p126 = scmp.ne.s32.totalorder %s118, %s120
      %p127 = scmp.eq.s32.totalorder %s21, 3
      %p128 = por %p126, %p127
      %p129 = scmp.ne.s32.totalorder %s120, %s121
      %p130 = scmp.eq.s32.totalorder %s21, 0
      %p131 = por %p129, %p130
      %p132 = scmp.ne.s32.totalorder %s120, %s121
      %p133 = scmp.eq.s32.totalorder %s22, 3
      %p134 = por %p132, %p133
      %p136 = scmp.ne.s32.totalorder %s121, %s135
      %p137 = scmp.eq.s32.totalorder %s22, 0
      %p138 = por %p136, %p137
      %s140 = sadd.s32 %s139, 1
      %p143 = scmp.eq.s32.totalorder %s16, 3
      %p144 = scmp.ne.s32.totalorder %s139, %s141
      %p145 = scmp.eq.s32.totalorder %s16, 0
      %p146 = por %p144, %p145
      %p147 = scmp.ne.s32.totalorder %s139, %s141
      %p148 = scmp.eq.s32.totalorder %s21, 3
      %p149 = por %p147, %p148
      %p150 = scmp.ne.s32.totalorder %s141, %s142
      %p151 = scmp.eq.s32.totalorder %s21, 0
      %p152 = por %p150, %p151
      %p153 = scmp.ne.s32.totalorder %s141, %s142
      %p154 = scmp.eq.s32.totalorder %s22, 3
      %p155 = por %p153, %p154
      %p157 = scmp.ne.s32.totalorder %s142, %s156
      %p158 = scmp.eq.s32.totalorder %s22, 0
      %p159 = por %p157, %p158
      %s161 = sadd.s32 %s160, 1
      %p164 = scmp.eq.s32.totalorder %s16, 3
      %p165 = scmp.ne.s32.totalorder %s160, %s162
      %p166 = scmp.eq.s32.totalorder %s16, 0
      %p167 = por %p165, %p166
      %p168 = scmp.ne.s32.totalorder %s160, %s162
      %p169 = scmp.eq.s32.totalorder %s21, 3
      %p170 = por %p168, %p169
      %p171 = scmp.ne.s32.totalorder %s162, %s163
      %p172 = scmp.eq.s32.totalorder %s21, 0
      %p173 = por %p171, %p172
      %p174 = scmp.ne.s32.totalorder %s162, %s163
      %p175 = scmp.eq.s32.totalorder %s22, 3
      %p176 = por %p174, %p175
      %p178 = scmp.ne.s32.totalorder %s163, %s177
      %p179 = scmp.eq.s32.totalorder %s22, 0
      %p180 = por %p178, %p179
      %s181 = ssub.s32 %s16, %s23
      %p182 = scmp.eq.s32.totalorder %s181, 0
      %s184 = sadd.s32 %s183, 1
      %s185 = scalar_select %p182, %s183, %s184
      %p188 = pneg %p182
      %p189 = scmp.eq.s32.totalorder %s16, 3
      %p190 = por %p188, %p189
      %p191 = scmp.ne.s32.totalorder %s183, %s186
      %p192 = scmp.eq.s32.totalorder %s16, 0
      %p193 = por %p191, %p192
      %p194 = scmp.ne.s32.totalorder %s183, %s186
      %p195 = scmp.eq.s32.totalorder %s21, 3
      %p196 = por %p194, %p195
      %p197 = scmp.ne.s32.totalorder %s186, %s187
      %p198 = scmp.eq.s32.totalorder %s21, 0
      %p199 = por %p197, %p198
      %p200 = scmp.ne.s32.totalorder %s186, %s187
      %p201 = scmp.eq.s32.totalorder %s22, 3
      %p202 = por %p200, %p201
      %p204 = scmp.ne.s32.totalorder %s187, %s203
      %p205 = scmp.eq.s32.totalorder %s22, 0
      %p206 = por %p204, %p205
      %p207 = scmp.le.s32.totalorder 1, %s16
      %p208 = scmp.lt.s32.totalorder %s16, 5
      %p209 = pnand %p207, %p208
      %p210 = pneg %p209
      // Predicated region
      $region9: #{tpu_custom_call.1} parent=5 // pred_check
        _
      $region10: #{tpu_custom_call.1} parent=5 // pred_check_branch
        %212 = sbr.rel (%p209) target = $region12
      $region11: #{tpu_custom_call.1} parent=5 // pred_region
        %s213 = ssub.s32 %s16, 1
        // Predicated region
        $region13: #{tpu_custom_call.1} parent=11 // pred_check
          %p214 = pneg %p89
        $region14: #{tpu_custom_call.1} parent=11 // pred_check_branch
          %216 = sbr.rel (%p214) target = $region16
        $region15: #{tpu_custom_call.1} parent=11 // pred_region
          _
        $region16: #{tpu_custom_call.1} parent=11 // pred_fallthru
          _
        // Predicated region
        $region17: #{tpu_custom_call.1} parent=11 // pred_check
          %p217 = pneg %p110
        $region18: #{tpu_custom_call.1} parent=11 // pred_check_branch
          %219 = sbr.rel (%p217) target = $region20
        $region19: #{tpu_custom_call.1} parent=11 // pred_region
          _
        $region20: #{tpu_custom_call.1} parent=11 // pred_fallthru
          _
        // Predicated region
        $region21: #{tpu_custom_call.1} parent=11 // pred_check
          %p220 = pneg %p131
        $region22: #{tpu_custom_call.1} parent=11 // pred_check_branch
          %222 = sbr.rel (%p220) target = $region24
        $region23: #{tpu_custom_call.1} parent=11 // pred_region
          _
        $region24: #{tpu_custom_call.1} parent=11 // pred_fallthru
          _
        // Predicated region
        $region25: #{tpu_custom_call.1} parent=11 // pred_check
          %p223 = pneg %p152
        $region26: #{tpu_custom_call.1} parent=11 // pred_check_branch
          %225 = sbr.rel (%p223) target = $region28
        $region27: #{tpu_custom_call.1} parent=11 // pred_region
          _
        $region28: #{tpu_custom_call.1} parent=11 // pred_fallthru
          _
        // Predicated region
        $region29: #{tpu_custom_call.1} parent=11 // pred_check
          %p226 = pneg %p173
        $region30: #{tpu_custom_call.1} parent=11 // pred_check_branch
          %228 = sbr.rel (%p226) target = $region32
        $region31: #{tpu_custom_call.1} parent=11 // pred_region
          _
        $region32: #{tpu_custom_call.1} parent=11 // pred_fallthru
          _
      $region12: #{tpu_custom_call.1} parent=5 // pred_fallthru
        _
      %p229 = scmp.lt.s32.totalorder %s16, 4
      // Predicated region
      $region33: #{tpu_custom_call.1} parent=5 // pred_check
        %p230 = pneg %p229
      $region34: #{tpu_custom_call.1} parent=5 // pred_check_branch
        %232 = sbr.rel (%p230) target = $region36
      $region35: #{tpu_custom_call.1} parent=5 // pred_region
        // Predicated region
        $region37: #{tpu_custom_call.1} parent=35 // pred_check
          %p233 = pneg %p36
        $region38: #{tpu_custom_call.1} parent=35 // pred_check_branch
          %235 = sbr.rel (%p233) target = $region40
        $region39: #{tpu_custom_call.1} parent=35 // pred_region
          %s236 = smul.u32 32, %s16
          %s237 = ssub.s32 125, %s236
          %p238 = scmp.lt.s32.totalorder %s237, 32
          %s239 = scalar_select %p238, %s237, 32
          %s240 = smul.u32 64, %s239
          %p241 = scmp.lt.s32.totalorder %s236, 124
          %s242 = scalar_select %p241, %s236, 124
          %s243 = smul.addr %s242, 4
          %s244 = scalar_lea.vmem %s0, %s243
          %s245 = smul.u32 32, %s16
          %s246 = ssub.s32 125, %s245
          %p247 = scmp.lt.s32.totalorder %s246, 32
          %s248 = scalar_select %p247, %s246, 32
          %s249 = smul.u32 64, %s248
        $region40: #{tpu_custom_call.1} parent=35 // pred_fallthru
          _
        // Predicated region
        $region41: #{tpu_custom_call.1} parent=35 // pred_check
          %p250 = pneg %p62
        $region42: #{tpu_custom_call.1} parent=35 // pred_check_branch
          %252 = sbr.rel (%p250) target = $region44
        $region43: #{tpu_custom_call.1} parent=35 // pred_region
          %s253 = smul.u32 32, %s16
          %s254 = ssub.s32 125, %s253
          %p255 = scmp.lt.s32.totalorder %s254, 32
          %s256 = scalar_select %p255, %s254, 32
          %s257 = smul.u32 64, %s256
          %p258 = scmp.lt.s32.totalorder %s253, 124
          %s259 = scalar_select %p258, %s253, 124
          %s260 = smul.addr %s259, 4
          %s261 = scalar_lea.vmem %s1, %s260
          %s262 = smul.u32 32, %s16
          %s263 = ssub.s32 125, %s262
          %p264 = scmp.lt.s32.totalorder %s263, 32
          %s265 = scalar_select %p264, %s263, 32
          %s266 = smul.u32 64, %s265
        $region44: #{tpu_custom_call.1} parent=35 // pred_fallthru
          _
      $region36: #{tpu_custom_call.1} parent=5 // pred_fallthru
        _
      %p267 = scmp.le.s32.totalorder 1, %s16
      %p268 = scmp.lt.s32.totalorder %s16, 5
      %p269 = pnand %p267, %p268
      %p270 = pneg %p269
      // Predicated region
      $region45: #{tpu_custom_call.1} parent=5 // pred_check
        _
      $region46: #{tpu_custom_call.1} parent=5 // pred_check_branch
        %272 = sbr.rel (%p269) target = $region48
      $region47: #{tpu_custom_call.1} parent=5 // pred_region
        %s273 = ssub.s32 %s16, 1
        %s274 = smul.u32 32, %s21
        %s275 = ssub.s32 125, %s274
        %p276 = scmp.lt.s32.totalorder %s275, 32
        %s277 = scalar_select %p276, %s275, 32
        %s278 = smul.u32 64, %s277
        %p279 = scmp.lt.s32.totalorder %s274, 124
        %s280 = scalar_select %p279, %s274, 124
        %s281 = smul.addr %s280, 4
        %s282 = scalar_lea.vmem %s0, %s281
        %p283 = pneg %p42
        %p284 = pneg %p39
        %s285 = smul.u32 32, %s21
        %s286 = ssub.s32 125, %s285
        %p287 = scmp.lt.s32.totalorder %s286, 32
        %s288 = scalar_select %p287, %s286, 32
        %s289 = smul.u32 64, %s288
        %p290 = scmp.lt.s32.totalorder %s285, 124
        %s291 = scalar_select %p290, %s285, 124
        %s292 = smul.addr %s291, 4
        %s293 = scalar_lea.vmem %s1, %s292
        %p294 = pneg %p68
        %p295 = pneg %p65
        %p296 = pneg %p89
        %p297 = pneg %p86
        %p298 = pneg %p110
        %p299 = pneg %p107
        %p300 = pneg %p131
        %p301 = pneg %p128
        %p302 = pneg %p152
        %p303 = pneg %p149
        %p304 = pneg %p173
        %p305 = pneg %p170
        %p306 = pneg %p199
        %p307 = pneg %p196
        %s308 = sand.u32 %s186, 1
        %s309 = scalar_lea.sflag [#allocation3], %s308
        %s310 = sand.u32 %s186, 1
        %s311 = smul.addr %s310, 128
        %s312 = scalar_lea.vmem [#allocation2], %s311
        %s313 = smul.u32 32, %s21
        %s314 = ssub.s32 125, %s313
        %p315 = scmp.lt.s32.totalorder %s314, 32
        %s316 = scalar_select %p315, %s314, 32
        %s317 = smul.u32 64, %s316
        %p318 = scmp.lt.s32.totalorder %s313, 124
        %s319 = scalar_select %p318, %s313, 124
        %s320 = smul.addr %s319, 4
        %s321 = scalar_lea.vmem %s0, %s320
        %s322 = smul.u32 32, %s21
        %s323 = ssub.s32 125, %s322
        %p324 = scmp.lt.s32.totalorder %s323, 32
        %s325 = scalar_select %p324, %s323, 32
        %s326 = smul.u32 64, %s325
        %s327 = smul.u32 32, %s21
        %s328 = ssub.s32 125, %s327
        %p329 = scmp.lt.s32.totalorder %s328, 32
        %s330 = scalar_select %p329, %s328, 32
        %s331 = smul.u32 64, %s330
        %p332 = scmp.lt.s32.totalorder %s327, 124
        %s333 = scalar_select %p332, %s327, 124
        %s334 = smul.addr %s333, 4
        %s335 = scalar_lea.vmem %s1, %s334
        %s336 = smul.u32 32, %s21
        %s337 = ssub.s32 125, %s336
        %p338 = scmp.lt.s32.totalorder %s337, 32
        %s339 = scalar_select %p338, %s337, 32
        %s340 = smul.u32 64, %s339
        %s341 = smul.u32 32, %s21
        %s342 = ssub.s32 125, %s341
        %p343 = scmp.lt.s32.totalorder %s342, 32
        %s344 = scalar_select %p343, %s342, 32
        %s345 = smul.u32 64, %s344
        %v347 = vld [vmem:[%s321] sm:$0xf]
        %v348 = vld [vmem:[%s321 + $0x4] sm:$0xf]
        %v349 = vld [vmem:[%s321 + $0x8] sm:$0xf]
        %v350 = vld [vmem:[%s321 + $0xc] sm:$0xf]
        %v351 = vld [vmem:[%s321 + $0x10] sm:$0xf]
        %v352 = vld [vmem:[%s321 + $0x14] sm:$0xf]
        %v353 = vld [vmem:[%s321 + $0x18] sm:$0xf]
        %v354 = vld [vmem:[%s321 + $0x1c] sm:$0xf]
        %v355 = vld [vmem:[%s321 + $0x20] sm:$0xf]
        %v356 = vld [vmem:[%s321 + $0x24] sm:$0xf]
        %v357 = vld [vmem:[%s321 + $0x28] sm:$0xf]
        %v358 = vld [vmem:[%s321 + $0x2c] sm:$0xf]
        %v359 = vld [vmem:[%s321 + $0x30] sm:$0xf]
        %v360 = vld [vmem:[%s321 + $0x34] sm:$0xf]
        %v361 = vld [vmem:[%s321 + $0x38] sm:$0xf]
        %v362 = vld [vmem:[%s321 + $0x3c] sm:$0xf]
        %v363 = vld [vmem:[%s321 + $0x40] sm:$0xf]
        %v364 = vld [vmem:[%s321 + $0x44] sm:$0xf]
        %v365 = vld [vmem:[%s321 + $0x48] sm:$0xf]
        %v366 = vld [vmem:[%s321 + $0x4c] sm:$0xf]
        %v367 = vld [vmem:[%s321 + $0x50] sm:$0xf]
        %v368 = vld [vmem:[%s321 + $0x54] sm:$0xf]
        %v369 = vld [vmem:[%s321 + $0x58] sm:$0xf]
        %v370 = vld [vmem:[%s321 + $0x5c] sm:$0xf]
        %v371 = vld [vmem:[%s321 + $0x60] sm:$0xf]
        %v372 = vld [vmem:[%s321 + $0x64] sm:$0xf]
        %v373 = vld [vmem:[%s321 + $0x68] sm:$0xf]
        %v374 = vld [vmem:[%s321 + $0x6c] sm:$0xf]
        %v375 = vld [vmem:[%s321 + $0x70] sm:$0xf]
        %v376 = vld [vmem:[%s321 + $0x74] sm:$0xf]
        %v377 = vld [vmem:[%s321 + $0x78] sm:$0xf]
        %v378 = vld [vmem:[%s321 + $0x7c] sm:$0xf]
        %v379 = vld [vmem:[%s335] sm:$0xf]
        %v380 = vld [vmem:[%s335 + $0x4] sm:$0xf]
        %v381 = vld [vmem:[%s335 + $0x8] sm:$0xf]
        %v382 = vld [vmem:[%s335 + $0xc] sm:$0xf]
        %v383 = vld [vmem:[%s335 + $0x10] sm:$0xf]
        %v384 = vld [vmem:[%s335 + $0x14] sm:$0xf]
        %v385 = vld [vmem:[%s335 + $0x18] sm:$0xf]
        %v386 = vld [vmem:[%s335 + $0x1c] sm:$0xf]
        %v387 = vld [vmem:[%s335 + $0x20] sm:$0xf]
        %v388 = vld [vmem:[%s335 + $0x24] sm:$0xf]
        %v389 = vld [vmem:[%s335 + $0x28] sm:$0xf]
        %v390 = vld [vmem:[%s335 + $0x2c] sm:$0xf]
        %v391 = vld [vmem:[%s335 + $0x30] sm:$0xf]
        %v392 = vld [vmem:[%s335 + $0x34] sm:$0xf]
        %v393 = vld [vmem:[%s335 + $0x38] sm:$0xf]
        %v394 = vld [vmem:[%s335 + $0x3c] sm:$0xf]
        %v395 = vld [vmem:[%s335 + $0x40] sm:$0xf]
        %v396 = vld [vmem:[%s335 + $0x44] sm:$0xf]
        %v397 = vld [vmem:[%s335 + $0x48] sm:$0xf]
        %v398 = vld [vmem:[%s335 + $0x4c] sm:$0xf]
        %v399 = vld [vmem:[%s335 + $0x50] sm:$0xf]
        %v400 = vld [vmem:[%s335 + $0x54] sm:$0xf]
        %v401 = vld [vmem:[%s335 + $0x58] sm:$0xf]
        %v402 = vld [vmem:[%s335 + $0x5c] sm:$0xf]
        %v403 = vld [vmem:[%s335 + $0x60] sm:$0xf]
        %v404 = vld [vmem:[%s335 + $0x64] sm:$0xf]
        %v405 = vld [vmem:[%s335 + $0x68] sm:$0xf]
        %v406 = vld [vmem:[%s335 + $0x6c] sm:$0xf]
        %v407 = vld [vmem:[%s335 + $0x70] sm:$0xf]
        %v408 = vld [vmem:[%s335 + $0x74] sm:$0xf]
        %v409 = vld [vmem:[%s335 + $0x78] sm:$0xf]
        %v410 = vld [vmem:[%s335 + $0x7c] sm:$0xf]
        %v411 = vld [vmem:[%s2] sm:$0x1]
        %v412 = vld [vmem:[%s2 + $0x1] sm:$0x1]
        %v413 = vld [vmem:[%s2 + $0x2] sm:$0x1]
        %v414 = vld [vmem:[%s2 + $0x3] sm:$0x1]
        %v415 = vld [vmem:[%s2 + $0x4] sm:$0x1]
        %v416 = vld [vmem:[%s2 + $0x5] sm:$0x1]
        %v417 = vunpack.c.l.bf16 %v347
        %v418 = vunpack.c.l.bf16 %v348
        %v419 = vunpack.c.l.bf16 %v349
        %v420 = vunpack.c.l.bf16 %v350
        %v421 = vunpack.c.l.bf16 %v351
        %v422 = vunpack.c.l.bf16 %v352
        %v423 = vunpack.c.l.bf16 %v353
        %v424 = vunpack.c.l.bf16 %v354
        %v425 = vunpack.c.l.bf16 %v355
        %v426 = vunpack.c.l.bf16 %v356
        %v427 = vunpack.c.l.bf16 %v357
        %v428 = vunpack.c.l.bf16 %v358
        %v429 = vunpack.c.l.bf16 %v359
        %v430 = vunpack.c.l.bf16 %v360
        %v431 = vunpack.c.l.bf16 %v361
        %v432 = vunpack.c.l.bf16 %v362
        %v433 = vunpack.c.l.bf16 %v363
        %v434 = vunpack.c.l.bf16 %v364
        %v435 = vunpack.c.l.bf16 %v365
        %v436 = vunpack.c.l.bf16 %v366
        %v437 = vunpack.c.l.bf16 %v367
        %v438 = vunpack.c.l.bf16 %v368
        %v439 = vunpack.c.l.bf16 %v369
        %v440 = vunpack.c.l.bf16 %v370
        %v441 = vunpack.c.l.bf16 %v371
        %v442 = vunpack.c.l.bf16 %v372
        %v443 = vunpack.c.l.bf16 %v373
        %v444 = vunpack.c.l.bf16 %v374
        %v445 = vunpack.c.l.bf16 %v375
        %v446 = vunpack.c.l.bf16 %v376
        %v447 = vunpack.c.l.bf16 %v377
        %v448 = vunpack.c.l.bf16 %v378
        %v449 = vlaneseq
        %v450 = vshrl.u32 %v449, 7
        %v451 = vsub.s32 0, %v450
        %v452 = vrot.slane %v411, %v451
        %v453 = vmul.f32 %v417, %v452
        %v454 = vmul.f32 %v418, %v452
        %v455 = vmul.f32 %v419, %v452
        %v456 = vmul.f32 %v420, %v452
        %v457 = vmul.f32 %v421, %v452
        %v458 = vmul.f32 %v422, %v452
        %v459 = vmul.f32 %v423, %v452
        %v460 = vmul.f32 %v424, %v452
        %v461 = vmul.f32 %v425, %v452
        %v462 = vmul.f32 %v426, %v452
        %v463 = vmul.f32 %v427, %v452
        %v464 = vmul.f32 %v428, %v452
        %v465 = vmul.f32 %v429, %v452
        %v466 = vmul.f32 %v430, %v452
        %v467 = vmul.f32 %v431, %v452
        %v468 = vmul.f32 %v432, %v452
        %v469 = vmul.f32 %v433, %v452
        %v470 = vmul.f32 %v434, %v452
        %v471 = vmul.f32 %v435, %v452
        %v472 = vmul.f32 %v436, %v452
        %v473 = vmul.f32 %v437, %v452
        %v474 = vmul.f32 %v438, %v452
        %v475 = vmul.f32 %v439, %v452
        %v476 = vmul.f32 %v440, %v452
        %v477 = vmul.f32 %v441, %v452
        %v478 = vmul.f32 %v442, %v452
        %v479 = vmul.f32 %v443, %v452
        %v480 = vmul.f32 %v444, %v452
        %v481 = vmul.f32 %v445, %v452
        %v482 = vmul.f32 %v446, %v452
        %v483 = vmul.f32 %v447, %v452
        %v484 = vmul.f32 %v448, %v452
        %v485 = vlaneseq
        %v486 = vshrl.u32 %v485, 7
        %v487 = vsub.s32 0, %v486
        %v488 = vrot.slane %v412, %v487
        %v489 = vadd.f32 %v453, %v488
        %v490 = vadd.f32 %v454, %v488
        %v491 = vadd.f32 %v455, %v488
        %v492 = vadd.f32 %v456, %v488
        %v493 = vadd.f32 %v457, %v488
        %v494 = vadd.f32 %v458, %v488
        %v495 = vadd.f32 %v459, %v488
        %v496 = vadd.f32 %v460, %v488
        %v497 = vadd.f32 %v461, %v488
        %v498 = vadd.f32 %v462, %v488
        %v499 = vadd.f32 %v463, %v488
        %v500 = vadd.f32 %v464, %v488
        %v501 = vadd.f32 %v465, %v488
        %v502 = vadd.f32 %v466, %v488
        %v503 = vadd.f32 %v467, %v488
        %v504 = vadd.f32 %v468, %v488
        %v505 = vadd.f32 %v469, %v488
        %v506 = vadd.f32 %v470, %v488
        %v507 = vadd.f32 %v471, %v488
        %v508 = vadd.f32 %v472, %v488
        %v509 = vadd.f32 %v473, %v488
        %v510 = vadd.f32 %v474, %v488
        %v511 = vadd.f32 %v475, %v488
        %v512 = vadd.f32 %v476, %v488
        %v513 = vadd.f32 %v477, %v488
        %v514 = vadd.f32 %v478, %v488
        %v515 = vadd.f32 %v479, %v488
        %v516 = vadd.f32 %v480, %v488
        %v517 = vadd.f32 %v481, %v488
        %v518 = vadd.f32 %v482, %v488
        %v519 = vadd.f32 %v483, %v488
        %v520 = vadd.f32 %v484, %v488
        %v521 = vmax.f32 %v489, 0.0
        %v522 = vmax.f32 %v490, 0.0
        %v523 = vmax.f32 %v491, 0.0
        %v524 = vmax.f32 %v492, 0.0
        %v525 = vmax.f32 %v493, 0.0
        %v526 = vmax.f32 %v494, 0.0
        %v527 = vmax.f32 %v495, 0.0
        %v528 = vmax.f32 %v496, 0.0
        %v529 = vmax.f32 %v497, 0.0
        %v530 = vmax.f32 %v498, 0.0
        %v531 = vmax.f32 %v499, 0.0
        %v532 = vmax.f32 %v500, 0.0
        %v533 = vmax.f32 %v501, 0.0
        %v534 = vmax.f32 %v502, 0.0
        %v535 = vmax.f32 %v503, 0.0
        %v536 = vmax.f32 %v504, 0.0
        %v537 = vmax.f32 %v505, 0.0
        %v538 = vmax.f32 %v506, 0.0
        %v539 = vmax.f32 %v507, 0.0
        %v540 = vmax.f32 %v508, 0.0
        %v541 = vmax.f32 %v509, 0.0
        %v542 = vmax.f32 %v510, 0.0
        %v543 = vmax.f32 %v511, 0.0
        %v544 = vmax.f32 %v512, 0.0
        %v545 = vmax.f32 %v513, 0.0
        %v546 = vmax.f32 %v514, 0.0
        %v547 = vmax.f32 %v515, 0.0
        %v548 = vmax.f32 %v516, 0.0
        %v549 = vmax.f32 %v517, 0.0
        %v550 = vmax.f32 %v518, 0.0
        %v551 = vmax.f32 %v519, 0.0
        %v552 = vmax.f32 %v520, 0.0
        %v553 = vld [vmem:[%s4] sm:$0xf]
        %v554 = vld [vmem:[%s4 + $0x4] sm:$0xf]
        %v555 = vld [vmem:[%s4 + $0x8] sm:$0xf]
        %v556 = vld [vmem:[%s4 + $0xc] sm:$0xf]
        %v557 = vld [vmem:[%s4 + $0x10] sm:$0xf]
        %v558 = vld [vmem:[%s4 + $0x14] sm:$0xf]
        %v559 = vld [vmem:[%s4 + $0x18] sm:$0xf]
        %v560 = vld [vmem:[%s4 + $0x1c] sm:$0xf]
        %v561 = vld [vmem:[%s4 + $0x20] sm:$0xf]
        %v562 = vld [vmem:[%s4 + $0x24] sm:$0xf]
        %v563 = vld [vmem:[%s4 + $0x28] sm:$0xf]
        %v564 = vld [vmem:[%s4 + $0x2c] sm:$0xf]
        %v597 = vunpack.c.l.b16 %v379
        %v598 = vunpack.c.l.b16 %v380
        %v599 = vunpack.c.l.b16 %v381
        %v600 = vunpack.c.l.b16 %v382
        %v601 = vunpack.c.l.b16 %v383
        %v602 = vunpack.c.l.b16 %v384
        %v603 = vunpack.c.l.b16 %v385
        %v604 = vunpack.c.l.b16 %v386
        %v605 = vunpack.c.l.b16 %v387
        %v606 = vunpack.c.l.b16 %v388
        %v607 = vunpack.c.l.b16 %v389
        %v608 = vunpack.c.l.b16 %v390
        %v609 = vunpack.c.l.b16 %v391
        %v610 = vunpack.c.l.b16 %v392
        %v611 = vunpack.c.l.b16 %v393
        %v612 = vunpack.c.l.b16 %v394
        %v613 = vunpack.c.l.b16 %v395
        %v614 = vunpack.c.l.b16 %v396
        %v615 = vunpack.c.l.b16 %v397
        %v616 = vunpack.c.l.b16 %v398
        %v617 = vunpack.c.l.b16 %v399
        %v618 = vunpack.c.l.b16 %v400
        %v619 = vunpack.c.l.b16 %v401
        %v620 = vunpack.c.l.b16 %v402
        %v621 = vunpack.c.l.b16 %v403
        %v622 = vunpack.c.l.b16 %v404
        %v623 = vunpack.c.l.b16 %v405
        %v624 = vunpack.c.l.b16 %v406
        %v625 = vunpack.c.l.b16 %v407
        %v626 = vunpack.c.l.b16 %v408
        %v627 = vunpack.c.l.b16 %v409
        %v628 = vunpack.c.l.b16 %v410
        %v629 = vpack.c.b16 %v598, %v597
        %v630 = vpack.c.b16 %v600, %v599
        %v631 = vpack.c.b16 %v602, %v601
        %v632 = vpack.c.b16 %v604, %v603
        %v633 = vpack.c.b16 %v606, %v605
        %v634 = vpack.c.b16 %v608, %v607
        %v635 = vpack.c.b16 %v610, %v609
        %v636 = vpack.c.b16 %v612, %v611
        %v637 = vpack.c.b16 %v614, %v613
        %v638 = vpack.c.b16 %v616, %v615
        %v639 = vpack.c.b16 %v618, %v617
        %v640 = vpack.c.b16 %v620, %v619
        %v641 = vpack.c.b16 %v622, %v621
        %v642 = vpack.c.b16 %v624, %v623
        %v643 = vpack.c.b16 %v626, %v625
        %v644 = vpack.c.b16 %v628, %v627
        %v657 = vunpack.c.l.b16 %v553
        %v658 = vunpack.c.l.b16 %v554
        %v659 = vunpack.c.l.b16 %v555
        %v660 = vunpack.c.l.b16 %v556
        %v661 = vunpack.c.l.b16 %v557
        %v662 = vunpack.c.l.b16 %v558
        %v663 = vunpack.c.l.b16 %v559
        %v664 = vunpack.c.l.b16 %v560
        %v665 = vunpack.c.l.b16 %v561
        %v666 = vunpack.c.l.b16 %v562
        %v667 = vunpack.c.l.b16 %v563
        %v668 = vunpack.c.l.b16 %v564
        %v669 = vpack.c.b16 %v658, %v657
        %v670 = vpack.c.b16 %v660, %v659
        %v671 = vpack.c.b16 %v662, %v661
        %v672 = vpack.c.b16 %v664, %v663
        %v673 = vpack.c.b16 %v666, %v665
        %v674 = vpack.c.b16 %v668, %v667
        %vm681 = vcmask 785408
        %v683 = vsel %vm681, %v629, 0
        %v686 = vsel %vm681, %v630, 0
        %v689 = vsel %vm681, %v631, 0
        %v692 = vsel %vm681, %v632, 0
        %v695 = vsel %vm681, %v633, 0
        %v698 = vsel %vm681, %v634, 0
        %v701 = vsel %vm681, %v635, 0
        %v704 = vsel %vm681, %v636, 0
        %v707 = vsel %vm681, %v637, 0
        %v710 = vsel %vm681, %v638, 0
        %v713 = vsel %vm681, %v639, 0
        %v716 = vsel %vm681, %v640, 0
        %v719 = vsel %vm681, %v641, 0
        %v722 = vsel %vm681, %v642, 0
        %v725 = vsel %vm681, %v643, 0
        %v728 = vsel %vm681, %v644, 0
        %730 = vmatprep.subr.bf16.mxu0 0
        %731 = vmatpush1.bf16.msra.mxu0 %v669
        %732 = vmatprep.subr.bf16.mxu0 0
        %733 = vmatpush1.bf16.msra.mxu0 %v670
        %734 = vmatprep.subr.bf16.mxu0 0
        %735 = vmatpush1.bf16.msra.mxu0 %v671
        %736 = vmatprep.subr.bf16.mxu0 0
        %737 = vmatpush1.bf16.msra.mxu0 %v672
        %738 = vmatprep.subr.bf16.mxu0 0
        %739 = vmatpush1.bf16.msra.mxu0 %v673
        %740 = vmatprep.subr.bf16.mxu0 0
        %741 = vmatpush1.bf16.msra.mxu0 %v674
        %742 = vmatprep.subr.bf16.mxu0 0
        %743 = vmatpush1.bf16.msra.mxu0 0
        %744 = vmatprep.subr.bf16.mxu0 0
        %745 = vmatpush1.bf16.msra.mxu0 0
        %746 = vmatprep.subr.bf16.mxu0 0
        %747 = vmatpush1.bf16.msra.mxu0 0
        %748 = vmatprep.subr.bf16.mxu0 0
        %749 = vmatpush1.bf16.msra.mxu0 0
        %750 = vmatprep.subr.bf16.mxu0 0
        %751 = vmatpush1.bf16.msra.mxu0 0
        %752 = vmatprep.subr.bf16.mxu0 0
        %753 = vmatpush1.bf16.msra.mxu0 0
        %754 = vmatprep.subr.bf16.mxu0 0
        %755 = vmatpush1.bf16.msra.mxu0 0
        %756 = vmatprep.subr.bf16.mxu0 0
        %757 = vmatpush1.bf16.msra.mxu0 0
        %758 = vmatprep.subr.bf16.mxu0 0
        %759 = vmatpush1.bf16.msra.mxu0 0
        %760 = vmatprep.subr.bf16.mxu0 0
        %761 = vmatpush1.bf16.msra.mxu0 0
        %762 = vmatprep.mubr.bf16.mxu0 0
        %763 = vmatmul.mubr.bf16.gmra.mrb[0].mxu0 %v683
        %v764 = vpop.f32.mrb[0].mxu0
        %v765 = vadd.f32 0.0, %v764
        %v766 = vpop.f32.mrb[0].mxu0
        %v767 = vpop.f32.mrb[0].mxu0
        %v768 = vadd.f32 0.0, %v767
        %v769 = vpop.f32.mrb[0].mxu0
        %770 = vmatprep.mubr.bf16.mxu0 0
        %771 = vmatmul.mubr.bf16.gmra.mrb[0].mxu0 %v686
        %v772 = vpop.f32.mrb[0].mxu0
        %v773 = vadd.f32 0.0, %v772
        %v774 = vpop.f32.mrb[0].mxu0
        %v775 = vpop.f32.mrb[0].mxu0
        %v776 = vadd.f32 0.0, %v775
        %v777 = vpop.f32.mrb[0].mxu0
        %778 = vmatprep.mubr.bf16.mxu0 0
        %779 = vmatmul.mubr.bf16.gmra.mrb[0].mxu0 %v689
        %v780 = vpop.f32.mrb[0].mxu0
        %v781 = vadd.f32 0.0, %v780
        %v782 = vpop.f32.mrb[0].mxu0
        %v783 = vpop.f32.mrb[0].mxu0
        %v784 = vadd.f32 0.0, %v783
        %v785 = vpop.f32.mrb[0].mxu0
        %786 = vmatprep.mubr.bf16.mxu0 0
        %787 = vmatmul.mubr.bf16.gmra.mrb[0].mxu0 %v692
        %v788 = vpop.f32.mrb[0].mxu0
        %v789 = vadd.f32 0.0, %v788
        %v790 = vpop.f32.mrb[0].mxu0
        %v791 = vpop.f32.mrb[0].mxu0
        %v792 = vadd.f32 0.0, %v791
        %v793 = vpop.f32.mrb[0].mxu0
        %794 = vmatprep.mubr.bf16.mxu0 0
        %795 = vmatmul.mubr.bf16.gmra.mrb[0].mxu0 %v695
        %v796 = vpop.f32.mrb[0].mxu0
        %v797 = vadd.f32 0.0, %v796
        %v798 = vpop.f32.mrb[0].mxu0
        %v799 = vpop.f32.mrb[0].mxu0
        %v800 = vadd.f32 0.0, %v799
        %v801 = vpop.f32.mrb[0].mxu0
        %802 = vmatprep.mubr.bf16.mxu0 0
        %803 = vmatmul.mubr.bf16.gmra.mrb[0].mxu0 %v698
        %v804 = vpop.f32.mrb[0].mxu0
        %v805 = vadd.f32 0.0, %v804
        %v806 = vpop.f32.mrb[0].mxu0
        %v807 = vpop.f32.mrb[0].mxu0
        %v808 = vadd.f32 0.0, %v807
        %v809 = vpop.f32.mrb[0].mxu0
        %810 = vmatprep.mubr.bf16.mxu0 0
        %811 = vmatmul.mubr.bf16.gmra.mrb[0].mxu0 %v701
        %v812 = vpop.f32.mrb[0].mxu0
        %v813 = vadd.f32 0.0, %v812
        %v814 = vpop.f32.mrb[0].mxu0
        %v815 = vpop.f32.mrb[0].mxu0
        %v816 = vadd.f32 0.0, %v815
        %v817 = vpop.f32.mrb[0].mxu0
        %818 = vmatprep.mubr.bf16.mxu0 0
        %819 = vmatmul.mubr.bf16.gmra.mrb[0].mxu0 %v704
        %v820 = vpop.f32.mrb[0].mxu0
        %v821 = vadd.f32 0.0, %v820
        %v822 = vpop.f32.mrb[0].mxu0
        %v823 = vpop.f32.mrb[0].mxu0
        %v824 = vadd.f32 0.0, %v823
        %v825 = vpop.f32.mrb[0].mxu0
        %826 = vmatprep.mubr.bf16.mxu0 0
        %827 = vmatmul.mubr.bf16.gmra.mrb[0].mxu0 %v707
        %v828 = vpop.f32.mrb[0].mxu0
        %v829 = vadd.f32 0.0, %v828
        %v830 = vpop.f32.mrb[0].mxu0
        %v831 = vpop.f32.mrb[0].mxu0
        %v832 = vadd.f32 0.0, %v831
        %v833 = vpop.f32.mrb[0].mxu0
        %834 = vmatprep.mubr.bf16.mxu0 0
        %835 = vmatmul.mubr.bf16.gmra.mrb[0].mxu0 %v710
        %v836 = vpop.f32.mrb[0].mxu0
        %v837 = vadd.f32 0.0, %v836
        %v838 = vpop.f32.mrb[0].mxu0
        %v839 = vpop.f32.mrb[0].mxu0
        %v840 = vadd.f32 0.0, %v839
        %v841 = vpop.f32.mrb[0].mxu0
        %842 = vmatprep.mubr.bf16.mxu0 0
        %843 = vmatmul.mubr.bf16.gmra.mrb[0].mxu0 %v713
        %v844 = vpop.f32.mrb[0].mxu0
        %v845 = vadd.f32 0.0, %v844
        %v846 = vpop.f32.mrb[0].mxu0
        %v847 = vpop.f32.mrb[0].mxu0
        %v848 = vadd.f32 0.0, %v847
        %v849 = vpop.f32.mrb[0].mxu0
        %850 = vmatprep.mubr.bf16.mxu0 0
        %851 = vmatmul.mubr.bf16.gmra.mrb[0].mxu0 %v716
        %v852 = vpop.f32.mrb[0].mxu0
        %v853 = vadd.f32 0.0, %v852
        %v854 = vpop.f32.mrb[0].mxu0
        %v855 = vpop.f32.mrb[0].mxu0
        %v856 = vadd.f32 0.0, %v855
        %v857 = vpop.f32.mrb[0].mxu0
        %858 = vmatprep.mubr.bf16.mxu0 0
        %859 = vmatmul.mubr.bf16.gmra.mrb[0].mxu0 %v719
        %v860 = vpop.f32.mrb[0].mxu0
        %v861 = vadd.f32 0.0, %v860
        %v862 = vpop.f32.mrb[0].mxu0
        %v863 = vpop.f32.mrb[0].mxu0
        %v864 = vadd.f32 0.0, %v863
        %v865 = vpop.f32.mrb[0].mxu0
        %866 = vmatprep.mubr.bf16.mxu0 0
        %867 = vmatmul.mubr.bf16.gmra.mrb[0].mxu0 %v722
        %v868 = vpop.f32.mrb[0].mxu0
        %v869 = vadd.f32 0.0, %v868
        %v870 = vpop.f32.mrb[0].mxu0
        %v871 = vpop.f32.mrb[0].mxu0
        %v872 = vadd.f32 0.0, %v871
        %v873 = vpop.f32.mrb[0].mxu0
        %874 = vmatprep.mubr.bf16.mxu0 0
        %875 = vmatmul.mubr.bf16.gmra.mrb[0].mxu0 %v725
        %v876 = vpop.f32.mrb[0].mxu0
        %v877 = vadd.f32 0.0, %v876
        %v878 = vpop.f32.mrb[0].mxu0
        %v879 = vpop.f32.mrb[0].mxu0
        %v880 = vadd.f32 0.0, %v879
        %v881 = vpop.f32.mrb[0].mxu0
        %882 = vmatprep.mubr.bf16.mxu0 0
        %883 = vmatmul.mubr.bf16.gmra.mrb[0].mxu0 %v728
        %v884 = vpop.f32.mrb[0].mxu0
        %v885 = vadd.f32 0.0, %v884
        %v886 = vpop.f32.mrb[0].mxu0
        %v887 = vpop.f32.mrb[0].mxu0
        %v888 = vadd.f32 0.0, %v887
        %v889 = vpop.f32.mrb[0].mxu0
        %890 = vdwg.mxu0
        %v891 = vpack.c.bf16 %v522, %v521
        %v892 = vpack.c.bf16 %v524, %v523
        %v893 = vpack.c.bf16 %v526, %v525
        %v894 = vpack.c.bf16 %v528, %v527
        %v895 = vpack.c.bf16 %v530, %v529
        %v896 = vpack.c.bf16 %v532, %v531
        %v897 = vpack.c.bf16 %v534, %v533
        %v898 = vpack.c.bf16 %v536, %v535
        %v899 = vpack.c.bf16 %v538, %v537
        %v900 = vpack.c.bf16 %v540, %v539
        %v901 = vpack.c.bf16 %v542, %v541
        %v902 = vpack.c.bf16 %v544, %v543
        %v903 = vpack.c.bf16 %v546, %v545
        %v904 = vpack.c.bf16 %v548, %v547
        %v905 = vpack.c.bf16 %v550, %v549
        %v906 = vpack.c.bf16 %v552, %v551
        %v907 = vld [vmem:[%s3] sm:$0xf]
        %v908 = vld [vmem:[%s3 + $0x4] sm:$0xf]
        %v909 = vld [vmem:[%s3 + $0x8] sm:$0xf]
        %v910 = vld [vmem:[%s3 + $0xc] sm:$0xf]
        %v911 = vld [vmem:[%s3 + $0x10] sm:$0xf]
        %v912 = vld [vmem:[%s3 + $0x14] sm:$0xf]
        %v913 = vld [vmem:[%s3 + $0x18] sm:$0xf]
        %v914 = vld [vmem:[%s3 + $0x1c] sm:$0xf]
        %v923 = vunpack.c.l.b16 %v907
        %v924 = vunpack.c.l.b16 %v908
        %v925 = vunpack.c.l.b16 %v909
        %v926 = vunpack.c.l.b16 %v910
        %v927 = vunpack.c.l.b16 %v911
        %v928 = vunpack.c.l.b16 %v912
        %v929 = vunpack.c.l.b16 %v913
        %v930 = vunpack.c.l.b16 %v914
        %v931 = vpack.c.b16 %v924, %v923
        %v932 = vpack.c.b16 %v926, %v925
        %v933 = vpack.c.b16 %v928, %v927
        %v934 = vpack.c.b16 %v930, %v929
        %vm939 = vcmask 523264
        %v941 = vsel %vm939, %v891, 0
        %v944 = vsel %vm939, %v892, 0
        %v947 = vsel %vm939, %v893, 0
        %v950 = vsel %vm939, %v894, 0
        %v953 = vsel %vm939, %v895, 0
        %v956 = vsel %vm939, %v896, 0
        %v959 = vsel %vm939, %v897, 0
        %v962 = vsel %vm939, %v898, 0
        %v965 = vsel %vm939, %v899, 0
        %v968 = vsel %vm939, %v900, 0
        %v971 = vsel %vm939, %v901, 0
        %v974 = vsel %vm939, %v902, 0
        %v977 = vsel %vm939, %v903, 0
        %v980 = vsel %vm939, %v904, 0
        %v983 = vsel %vm939, %v905, 0
        %v986 = vsel %vm939, %v906, 0
        %988 = vmatprep.subr.bf16.mxu0 0
        %989 = vmatpush1.bf16.msra.mxu0 %v931
        %990 = vmatprep.subr.bf16.mxu0 0
        %991 = vmatpush1.bf16.msra.mxu0 %v932
        %992 = vmatprep.subr.bf16.mxu0 0
        %993 = vmatpush1.bf16.msra.mxu0 %v933
        %994 = vmatprep.subr.bf16.mxu0 0
        %995 = vmatpush1.bf16.msra.mxu0 %v934
        %996 = vmatprep.subr.bf16.mxu0 0
        %997 = vmatpush1.bf16.msra.mxu0 0
        %998 = vmatprep.subr.bf16.mxu0 0
        %999 = vmatpush1.bf16.msra.mxu0 0
        %1000 = vmatprep.subr.bf16.mxu0 0
        %1001 = vmatpush1.bf16.msra.mxu0 0
        %1002 = vmatprep.subr.bf16.mxu0 0
        %1003 = vmatpush1.bf16.msra.mxu0 0
        %1004 = vmatprep.subr.bf16.mxu0 0
        %1005 = vmatpush1.bf16.msra.mxu0 0
        %1006 = vmatprep.subr.bf16.mxu0 0
        %1007 = vmatpush1.bf16.msra.mxu0 0
        %1008 = vmatprep.subr.bf16.mxu0 0
        %1009 = vmatpush1.bf16.msra.mxu0 0
        %1010 = vmatprep.subr.bf16.mxu0 0
        %1011 = vmatpush1.bf16.msra.mxu0 0
        %1012 = vmatprep.subr.bf16.mxu0 0
        %1013 = vmatpush1.bf16.msra.mxu0 0
        %1014 = vmatprep.subr.bf16.mxu0 0
        %1015 = vmatpush1.bf16.msra.mxu0 0
        %1016 = vmatprep.subr.bf16.mxu0 0
        %1017 = vmatpush1.bf16.msra.mxu0 0
        %1018 = vmatprep.subr.bf16.mxu0 0
        %1019 = vmatpush1.bf16.msra.mxu0 0
        %1020 = vmatprep.mubr.bf16.mxu0 0
        %1021 = vmatmul.mubr.bf16.gmra.mrb[0].mxu0 %v941
        %v1022 = vpop.f32.mrb[0].mxu0
        %v1023 = vadd.f32 %v765, %v1022
        %v1024 = vpop.f32.mrb[0].mxu0
        %v1025 = vpop.f32.mrb[0].mxu0
        %v1026 = vadd.f32 %v768, %v1025
        %v1027 = vpop.f32.mrb[0].mxu0
        %1028 = vmatprep.mubr.bf16.mxu0 0
        %1029 = vmatmul.mubr.bf16.gmra.mrb[0].mxu0 %v944
        %v1030 = vpop.f32.mrb[0].mxu0
        %v1031 = vadd.f32 %v773, %v1030
        %v1032 = vpop.f32.mrb[0].mxu0
        %v1033 = vpop.f32.mrb[0].mxu0
        %v1034 = vadd.f32 %v776, %v1033
        %v1035 = vpop.f32.mrb[0].mxu0
        %1036 = vmatprep.mubr.bf16.mxu0 0
        %1037 = vmatmul.mubr.bf16.gmra.mrb[0].mxu0 %v947
        %v1038 = vpop.f32.mrb[0].mxu0
        %v1039 = vadd.f32 %v781, %v1038
        %v1040 = vpop.f32.mrb[0].mxu0
        %v1041 = vpop.f32.mrb[0].mxu0
        %v1042 = vadd.f32 %v784, %v1041
        %v1043 = vpop.f32.mrb[0].mxu0
        %1044 = vmatprep.mubr.bf16.mxu0 0
        %1045 = vmatmul.mubr.bf16.gmra.mrb[0].mxu0 %v950
        %v1046 = vpop.f32.mrb[0].mxu0
        %v1047 = vadd.f32 %v789, %v1046
        %v1048 = vpop.f32.mrb[0].mxu0
        %v1049 = vpop.f32.mrb[0].mxu0
        %v1050 = vadd.f32 %v792, %v1049
        %v1051 = vpop.f32.mrb[0].mxu0
        %1052 = vmatprep.mubr.bf16.mxu0 0
        %1053 = vmatmul.mubr.bf16.gmra.mrb[0].mxu0 %v953
        %v1054 = vpop.f32.mrb[0].mxu0
        %v1055 = vadd.f32 %v797, %v1054
        %v1056 = vpop.f32.mrb[0].mxu0
        %v1057 = vpop.f32.mrb[0].mxu0
        %v1058 = vadd.f32 %v800, %v1057
        %v1059 = vpop.f32.mrb[0].mxu0
        %1060 = vmatprep.mubr.bf16.mxu0 0
        %1061 = vmatmul.mubr.bf16.gmra.mrb[0].mxu0 %v956
        %v1062 = vpop.f32.mrb[0].mxu0
        %v1063 = vadd.f32 %v805, %v1062
        %v1064 = vpop.f32.mrb[0].mxu0
        %v1065 = vpop.f32.mrb[0].mxu0
        %v1066 = vadd.f32 %v808, %v1065
        %v1067 = vpop.f32.mrb[0].mxu0
        %1068 = vmatprep.mubr.bf16.mxu0 0
        %1069 = vmatmul.mubr.bf16.gmra.mrb[0].mxu0 %v959
        %v1070 = vpop.f32.mrb[0].mxu0
        %v1071 = vadd.f32 %v813, %v1070
        %v1072 = vpop.f32.mrb[0].mxu0
        %v1073 = vpop.f32.mrb[0].mxu0
        %v1074 = vadd.f32 %v816, %v1073
        %v1075 = vpop.f32.mrb[0].mxu0
        %1076 = vmatprep.mubr.bf16.mxu0 0
        %1077 = vmatmul.mubr.bf16.gmra.mrb[0].mxu0 %v962
        %v1078 = vpop.f32.mrb[0].mxu0
        %v1079 = vadd.f32 %v821, %v1078
        %v1080 = vpop.f32.mrb[0].mxu0
        %v1081 = vpop.f32.mrb[0].mxu0
        %v1082 = vadd.f32 %v824, %v1081
        %v1083 = vpop.f32.mrb[0].mxu0
        %1084 = vmatprep.mubr.bf16.mxu0 0
        %1085 = vmatmul.mubr.bf16.gmra.mrb[0].mxu0 %v965
        %v1086 = vpop.f32.mrb[0].mxu0
        %v1087 = vadd.f32 %v829, %v1086
        %v1088 = vpop.f32.mrb[0].mxu0
        %v1089 = vpop.f32.mrb[0].mxu0
        %v1090 = vadd.f32 %v832, %v1089
        %v1091 = vpop.f32.mrb[0].mxu0
        %1092 = vmatprep.mubr.bf16.mxu0 0
        %1093 = vmatmul.mubr.bf16.gmra.mrb[0].mxu0 %v968
        %v1094 = vpop.f32.mrb[0].mxu0
        %v1095 = vadd.f32 %v837, %v1094
        %v1096 = vpop.f32.mrb[0].mxu0
        %v1097 = vpop.f32.mrb[0].mxu0
        %v1098 = vadd.f32 %v840, %v1097
        %v1099 = vpop.f32.mrb[0].mxu0
        %1100 = vmatprep.mubr.bf16.mxu0 0
        %1101 = vmatmul.mubr.bf16.gmra.mrb[0].mxu0 %v971
        %v1102 = vpop.f32.mrb[0].mxu0
        %v1103 = vadd.f32 %v845, %v1102
        %v1104 = vpop.f32.mrb[0].mxu0
        %v1105 = vpop.f32.mrb[0].mxu0
        %v1106 = vadd.f32 %v848, %v1105
        %v1107 = vpop.f32.mrb[0].mxu0
        %1108 = vmatprep.mubr.bf16.mxu0 0
        %1109 = vmatmul.mubr.bf16.gmra.mrb[0].mxu0 %v974
        %v1110 = vpop.f32.mrb[0].mxu0
        %v1111 = vadd.f32 %v853, %v1110
        %v1112 = vpop.f32.mrb[0].mxu0
        %v1113 = vpop.f32.mrb[0].mxu0
        %v1114 = vadd.f32 %v856, %v1113
        %v1115 = vpop.f32.mrb[0].mxu0
        %1116 = vmatprep.mubr.bf16.mxu0 0
        %1117 = vmatmul.mubr.bf16.gmra.mrb[0].mxu0 %v977
        %v1118 = vpop.f32.mrb[0].mxu0
        %v1119 = vadd.f32 %v861, %v1118
        %v1120 = vpop.f32.mrb[0].mxu0
        %v1121 = vpop.f32.mrb[0].mxu0
        %v1122 = vadd.f32 %v864, %v1121
        %v1123 = vpop.f32.mrb[0].mxu0
        %1124 = vmatprep.mubr.bf16.mxu0 0
        %1125 = vmatmul.mubr.bf16.gmra.mrb[0].mxu0 %v980
        %v1126 = vpop.f32.mrb[0].mxu0
        %v1127 = vadd.f32 %v869, %v1126
        %v1128 = vpop.f32.mrb[0].mxu0
        %v1129 = vpop.f32.mrb[0].mxu0
        %v1130 = vadd.f32 %v872, %v1129
        %v1131 = vpop.f32.mrb[0].mxu0
        %1132 = vmatprep.mubr.bf16.mxu0 0
        %1133 = vmatmul.mubr.bf16.gmra.mrb[0].mxu0 %v983
        %v1134 = vpop.f32.mrb[0].mxu0
        %v1135 = vadd.f32 %v877, %v1134
        %v1136 = vpop.f32.mrb[0].mxu0
        %v1137 = vpop.f32.mrb[0].mxu0
        %v1138 = vadd.f32 %v880, %v1137
        %v1139 = vpop.f32.mrb[0].mxu0
        %1140 = vmatprep.mubr.bf16.mxu0 0
        %1141 = vmatmul.mubr.bf16.gmra.mrb[0].mxu0 %v986
        %v1142 = vpop.f32.mrb[0].mxu0
        %v1143 = vadd.f32 %v885, %v1142
        %v1144 = vpop.f32.mrb[0].mxu0
        %v1145 = vpop.f32.mrb[0].mxu0
        %v1146 = vadd.f32 %v888, %v1145
        %v1147 = vpop.f32.mrb[0].mxu0
        %1148 = vdwg.mxu0
        %v1149 = vlaneseq
        %v1150 = vshrl.u32 %v1149, 7
        %v1151 = vsub.s32 0, %v1150
        %v1152 = vrot.slane %v413, %v1151
        %v1153 = vadd.f32 %v1023, %v1152
        %v1154 = vadd.f32 %v1026, %v1152
        %v1155 = vadd.f32 %v1031, %v1152
        %v1156 = vadd.f32 %v1034, %v1152
        %v1157 = vadd.f32 %v1039, %v1152
        %v1158 = vadd.f32 %v1042, %v1152
        %v1159 = vadd.f32 %v1047, %v1152
        %v1160 = vadd.f32 %v1050, %v1152
        %v1161 = vadd.f32 %v1055, %v1152
        %v1162 = vadd.f32 %v1058, %v1152
        %v1163 = vadd.f32 %v1063, %v1152
        %v1164 = vadd.f32 %v1066, %v1152
        %v1165 = vadd.f32 %v1071, %v1152
        %v1166 = vadd.f32 %v1074, %v1152
        %v1167 = vadd.f32 %v1079, %v1152
        %v1168 = vadd.f32 %v1082, %v1152
        %v1169 = vadd.f32 %v1087, %v1152
        %v1170 = vadd.f32 %v1090, %v1152
        %v1171 = vadd.f32 %v1095, %v1152
        %v1172 = vadd.f32 %v1098, %v1152
        %v1173 = vadd.f32 %v1103, %v1152
        %v1174 = vadd.f32 %v1106, %v1152
        %v1175 = vadd.f32 %v1111, %v1152
        %v1176 = vadd.f32 %v1114, %v1152
        %v1177 = vadd.f32 %v1119, %v1152
        %v1178 = vadd.f32 %v1122, %v1152
        %v1179 = vadd.f32 %v1127, %v1152
        %v1180 = vadd.f32 %v1130, %v1152
        %v1181 = vadd.f32 %v1135, %v1152
        %v1182 = vadd.f32 %v1138, %v1152
        %v1183 = vadd.f32 %v1143, %v1152
        %v1184 = vadd.f32 %v1146, %v1152
        %v1185 = vtanh.pop %v1153
        %v1186 = vtanh.pop %v1154
        %v1187 = vtanh.pop %v1155
        %v1188 = vtanh.pop %v1156
        %v1189 = vtanh.pop %v1157
        %v1190 = vtanh.pop %v1158
        %v1191 = vtanh.pop %v1159
        %v1192 = vtanh.pop %v1160
        %v1193 = vtanh.pop %v1161
        %v1194 = vtanh.pop %v1162
        %v1195 = vtanh.pop %v1163
        %v1196 = vtanh.pop %v1164
        %v1197 = vtanh.pop %v1165
        %v1198 = vtanh.pop %v1166
        %v1199 = vtanh.pop %v1167
        %v1200 = vtanh.pop %v1168
        %v1201 = vtanh.pop %v1169
        %v1202 = vtanh.pop %v1170
        %v1203 = vtanh.pop %v1171
        %v1204 = vtanh.pop %v1172
        %v1205 = vtanh.pop %v1173
        %v1206 = vtanh.pop %v1174
        %v1207 = vtanh.pop %v1175
        %v1208 = vtanh.pop %v1176
        %v1209 = vtanh.pop %v1177
        %v1210 = vtanh.pop %v1178
        %v1211 = vtanh.pop %v1179
        %v1212 = vtanh.pop %v1180
        %v1213 = vtanh.pop %v1181
        %v1214 = vtanh.pop %v1182
        %v1215 = vtanh.pop %v1183
        %v1216 = vtanh.pop %v1184
        %v1217 = vlaneseq
        %v1218 = vshrl.u32 %v1217, 7
        %v1219 = vsub.s32 0, %v1218
        %v1220 = vrot.slane %v414, %v1219
        %v1221 = vmul.f32 %v1185, %v1220
        %v1222 = vmul.f32 %v1186, %v1220
        %v1223 = vmul.f32 %v1187, %v1220
        %v1224 = vmul.f32 %v1188, %v1220
        %v1225 = vmul.f32 %v1189, %v1220
        %v1226 = vmul.f32 %v1190, %v1220
        %v1227 = vmul.f32 %v1191, %v1220
        %v1228 = vmul.f32 %v1192, %v1220
        %v1229 = vmul.f32 %v1193, %v1220
        %v1230 = vmul.f32 %v1194, %v1220
        %v1231 = vmul.f32 %v1195, %v1220
        %v1232 = vmul.f32 %v1196, %v1220
        %v1233 = vmul.f32 %v1197, %v1220
        %v1234 = vmul.f32 %v1198, %v1220
        %v1235 = vmul.f32 %v1199, %v1220
        %v1236 = vmul.f32 %v1200, %v1220
        %v1237 = vmul.f32 %v1201, %v1220
        %v1238 = vmul.f32 %v1202, %v1220
        %v1239 = vmul.f32 %v1203, %v1220
        %v1240 = vmul.f32 %v1204, %v1220
        %v1241 = vmul.f32 %v1205, %v1220
        %v1242 = vmul.f32 %v1206, %v1220
        %v1243 = vmul.f32 %v1207, %v1220
        %v1244 = vmul.f32 %v1208, %v1220
        %v1245 = vmul.f32 %v1209, %v1220
        %v1246 = vmul.f32 %v1210, %v1220
        %v1247 = vmul.f32 %v1211, %v1220
        %v1248 = vmul.f32 %v1212, %v1220
        %v1249 = vmul.f32 %v1213, %v1220
        %v1250 = vmul.f32 %v1214, %v1220
        %v1251 = vmul.f32 %v1215, %v1220
        %v1252 = vmul.f32 %v1216, %v1220
        %1253 = vadd.xlane.f32.xlu0 %v1221
        %v1254 = vpop.xlane.xlu0 %1253
        %1255 = vadd.xlane.f32.xlu0 %v1222
        %v1256 = vpop.xlane.xlu0 %1255
        %1257 = vadd.xlane.f32.xlu0 %v1223
        %v1258 = vpop.xlane.xlu0 %1257
        %1259 = vadd.xlane.f32.xlu0 %v1224
        %v1260 = vpop.xlane.xlu0 %1259
        %1261 = vadd.xlane.f32.xlu0 %v1225
        %v1262 = vpop.xlane.xlu0 %1261
        %1263 = vadd.xlane.f32.xlu0 %v1226
        %v1264 = vpop.xlane.xlu0 %1263
        %1265 = vadd.xlane.f32.xlu0 %v1227
        %v1266 = vpop.xlane.xlu0 %1265
        %1267 = vadd.xlane.f32.xlu0 %v1228
        %v1268 = vpop.xlane.xlu0 %1267
        %1269 = vadd.xlane.f32.xlu0 %v1229
        %v1270 = vpop.xlane.xlu0 %1269
        %1271 = vadd.xlane.f32.xlu0 %v1230
        %v1272 = vpop.xlane.xlu0 %1271
        %1273 = vadd.xlane.f32.xlu0 %v1231
        %v1274 = vpop.xlane.xlu0 %1273
        %1275 = vadd.xlane.f32.xlu0 %v1232
        %v1276 = vpop.xlane.xlu0 %1275
        %1277 = vadd.xlane.f32.xlu0 %v1233
        %v1278 = vpop.xlane.xlu0 %1277
        %1279 = vadd.xlane.f32.xlu0 %v1234
        %v1280 = vpop.xlane.xlu0 %1279
        %1281 = vadd.xlane.f32.xlu0 %v1235
        %v1282 = vpop.xlane.xlu0 %1281
        %1283 = vadd.xlane.f32.xlu0 %v1236
        %v1284 = vpop.xlane.xlu0 %1283
        %1285 = vadd.xlane.f32.xlu0 %v1237
        %v1286 = vpop.xlane.xlu0 %1285
        %1287 = vadd.xlane.f32.xlu0 %v1238
        %v1288 = vpop.xlane.xlu0 %1287
        %1289 = vadd.xlane.f32.xlu0 %v1239
        %v1290 = vpop.xlane.xlu0 %1289
        %1291 = vadd.xlane.f32.xlu0 %v1240
        %v1292 = vpop.xlane.xlu0 %1291
        %1293 = vadd.xlane.f32.xlu0 %v1241
        %v1294 = vpop.xlane.xlu0 %1293
        %1295 = vadd.xlane.f32.xlu0 %v1242
        %v1296 = vpop.xlane.xlu0 %1295
        %1297 = vadd.xlane.f32.xlu0 %v1243
        %v1298 = vpop.xlane.xlu0 %1297
        %1299 = vadd.xlane.f32.xlu0 %v1244
        %v1300 = vpop.xlane.xlu0 %1299
        %1301 = vadd.xlane.f32.xlu0 %v1245
        %v1302 = vpop.xlane.xlu0 %1301
        %1303 = vadd.xlane.f32.xlu0 %v1246
        %v1304 = vpop.xlane.xlu0 %1303
        %1305 = vadd.xlane.f32.xlu0 %v1247
        %v1306 = vpop.xlane.xlu0 %1305
        %1307 = vadd.xlane.f32.xlu0 %v1248
        %v1308 = vpop.xlane.xlu0 %1307
        %1309 = vadd.xlane.f32.xlu0 %v1249
        %v1310 = vpop.xlane.xlu0 %1309
        %1311 = vadd.xlane.f32.xlu0 %v1250
        %v1312 = vpop.xlane.xlu0 %1311
        %1313 = vadd.xlane.f32.xlu0 %v1251
        %v1314 = vpop.xlane.xlu0 %1313
        %1315 = vadd.xlane.f32.xlu0 %v1252
        %v1316 = vpop.xlane.xlu0 %1315
        %v1317 = vadd.f32 %v1254, 0.16245668
        %v1318 = vadd.f32 %v1256, 0.16245668
        %v1319 = vadd.f32 %v1258, 0.16245668
        %v1320 = vadd.f32 %v1260, 0.16245668
        %v1321 = vadd.f32 %v1262, 0.16245668
        %v1322 = vadd.f32 %v1264, 0.16245668
        %v1323 = vadd.f32 %v1266, 0.16245668
        %v1324 = vadd.f32 %v1268, 0.16245668
        %v1325 = vadd.f32 %v1270, 0.16245668
        %v1326 = vadd.f32 %v1272, 0.16245668
        %v1327 = vadd.f32 %v1274, 0.16245668
        %v1328 = vadd.f32 %v1276, 0.16245668
        %v1329 = vadd.f32 %v1278, 0.16245668
        %v1330 = vadd.f32 %v1280, 0.16245668
        %v1331 = vadd.f32 %v1282, 0.16245668
        %v1332 = vadd.f32 %v1284, 0.16245668
        %v1333 = vadd.f32 %v1286, 0.16245668
        %v1334 = vadd.f32 %v1288, 0.16245668
        %v1335 = vadd.f32 %v1290, 0.16245668
        %v1336 = vadd.f32 %v1292, 0.16245668
        %v1337 = vadd.f32 %v1294, 0.16245668
        %v1338 = vadd.f32 %v1296, 0.16245668
        %v1339 = vadd.f32 %v1298, 0.16245668
        %v1340 = vadd.f32 %v1300, 0.16245668
        %v1341 = vadd.f32 %v1302, 0.16245668
        %v1342 = vadd.f32 %v1304, 0.16245668
        %v1343 = vadd.f32 %v1306, 0.16245668
        %v1344 = vadd.f32 %v1308, 0.16245668
        %v1345 = vadd.f32 %v1310, 0.16245668
        %v1346 = vadd.f32 %v1312, 0.16245668
        %v1347 = vadd.f32 %v1314, 0.16245668
        %v1348 = vadd.f32 %v1316, 0.16245668
        %v1349 = vxor.u32 %v1317, 2147483648
        %v1350 = vxor.u32 %v1318, 2147483648
        %v1351 = vxor.u32 %v1319, 2147483648
        %v1352 = vxor.u32 %v1320, 2147483648
        %v1353 = vxor.u32 %v1321, 2147483648
        %v1354 = vxor.u32 %v1322, 2147483648
        %v1355 = vxor.u32 %v1323, 2147483648
        %v1356 = vxor.u32 %v1324, 2147483648
        %v1357 = vxor.u32 %v1325, 2147483648
        %v1358 = vxor.u32 %v1326, 2147483648
        %v1359 = vxor.u32 %v1327, 2147483648
        %v1360 = vxor.u32 %v1328, 2147483648
        %v1361 = vxor.u32 %v1329, 2147483648
        %v1362 = vxor.u32 %v1330, 2147483648
        %v1363 = vxor.u32 %v1331, 2147483648
        %v1364 = vxor.u32 %v1332, 2147483648
        %v1365 = vxor.u32 %v1333, 2147483648
        %v1366 = vxor.u32 %v1334, 2147483648
        %v1367 = vxor.u32 %v1335, 2147483648
        %v1368 = vxor.u32 %v1336, 2147483648
        %v1369 = vxor.u32 %v1337, 2147483648
        %v1370 = vxor.u32 %v1338, 2147483648
        %v1371 = vxor.u32 %v1339, 2147483648
        %v1372 = vxor.u32 %v1340, 2147483648
        %v1373 = vxor.u32 %v1341, 2147483648
        %v1374 = vxor.u32 %v1342, 2147483648
        %v1375 = vxor.u32 %v1343, 2147483648
        %v1376 = vxor.u32 %v1344, 2147483648
        %v1377 = vxor.u32 %v1345, 2147483648
        %v1378 = vxor.u32 %v1346, 2147483648
        %v1379 = vxor.u32 %v1347, 2147483648
        %v1380 = vxor.u32 %v1348, 2147483648
        %v1381 = vmul.f32 %v1349, 1.442695
        %v1382 = vpow.pop %v1381
        %v1383 = vmul.f32 %v1350, 1.442695
        %v1384 = vpow.pop %v1383
        %v1385 = vmul.f32 %v1351, 1.442695
        %v1386 = vpow.pop %v1385
        %v1387 = vmul.f32 %v1352, 1.442695
        %v1388 = vpow.pop %v1387
        %v1389 = vmul.f32 %v1353, 1.442695
        %v1390 = vpow.pop %v1389
        %v1391 = vmul.f32 %v1354, 1.442695
        %v1392 = vpow.pop %v1391
        %v1393 = vmul.f32 %v1355, 1.442695
        %v1394 = vpow.pop %v1393
        %v1395 = vmul.f32 %v1356, 1.442695
        %v1396 = vpow.pop %v1395
        %v1397 = vmul.f32 %v1357, 1.442695
        %v1398 = vpow.pop %v1397
        %v1399 = vmul.f32 %v1358, 1.442695
        %v1400 = vpow.pop %v1399
        %v1401 = vmul.f32 %v1359, 1.442695
        %v1402 = vpow.pop %v1401
        %v1403 = vmul.f32 %v1360, 1.442695
        %v1404 = vpow.pop %v1403
        %v1405 = vmul.f32 %v1361, 1.442695
        %v1406 = vpow.pop %v1405
        %v1407 = vmul.f32 %v1362, 1.442695
        %v1408 = vpow.pop %v1407
        %v1409 = vmul.f32 %v1363, 1.442695
        %v1410 = vpow.pop %v1409
        %v1411 = vmul.f32 %v1364, 1.442695
        %v1412 = vpow.pop %v1411
        %v1413 = vmul.f32 %v1365, 1.442695
        %v1414 = vpow.pop %v1413
        %v1415 = vmul.f32 %v1366, 1.442695
        %v1416 = vpow.pop %v1415
        %v1417 = vmul.f32 %v1367, 1.442695
        %v1418 = vpow.pop %v1417
        %v1419 = vmul.f32 %v1368, 1.442695
        %v1420 = vpow.pop %v1419
        %v1421 = vmul.f32 %v1369, 1.442695
        %v1422 = vpow.pop %v1421
        %v1423 = vmul.f32 %v1370, 1.442695
        %v1424 = vpow.pop %v1423
        %v1425 = vmul.f32 %v1371, 1.442695
        %v1426 = vpow.pop %v1425
        %v1427 = vmul.f32 %v1372, 1.442695
        %v1428 = vpow.pop %v1427
        %v1429 = vmul.f32 %v1373, 1.442695
        %v1430 = vpow.pop %v1429
        %v1431 = vmul.f32 %v1374, 1.442695
        %v1432 = vpow.pop %v1431
        %v1433 = vmul.f32 %v1375, 1.442695
        %v1434 = vpow.pop %v1433
        %v1435 = vmul.f32 %v1376, 1.442695
        %v1436 = vpow.pop %v1435
        %v1437 = vmul.f32 %v1377, 1.442695
        %v1438 = vpow.pop %v1437
        %v1439 = vmul.f32 %v1378, 1.442695
        %v1440 = vpow.pop %v1439
        %v1441 = vmul.f32 %v1379, 1.442695
        %v1442 = vpow.pop %v1441
        %v1443 = vmul.f32 %v1380, 1.442695
        %v1444 = vpow.pop %v1443
        %v1445 = vadd.f32 %v1382, 1.0
        %v1446 = vadd.f32 %v1384, 1.0
        %v1447 = vadd.f32 %v1386, 1.0
        %v1448 = vadd.f32 %v1388, 1.0
        %v1449 = vadd.f32 %v1390, 1.0
        %v1450 = vadd.f32 %v1392, 1.0
        %v1451 = vadd.f32 %v1394, 1.0
        %v1452 = vadd.f32 %v1396, 1.0
        %v1453 = vadd.f32 %v1398, 1.0
        %v1454 = vadd.f32 %v1400, 1.0
        %v1455 = vadd.f32 %v1402, 1.0
        %v1456 = vadd.f32 %v1404, 1.0
        %v1457 = vadd.f32 %v1406, 1.0
        %v1458 = vadd.f32 %v1408, 1.0
        %v1459 = vadd.f32 %v1410, 1.0
        %v1460 = vadd.f32 %v1412, 1.0
        %v1461 = vadd.f32 %v1414, 1.0
        %v1462 = vadd.f32 %v1416, 1.0
        %v1463 = vadd.f32 %v1418, 1.0
        %v1464 = vadd.f32 %v1420, 1.0
        %v1465 = vadd.f32 %v1422, 1.0
        %v1466 = vadd.f32 %v1424, 1.0
        %v1467 = vadd.f32 %v1426, 1.0
        %v1468 = vadd.f32 %v1428, 1.0
        %v1469 = vadd.f32 %v1430, 1.0
        %v1470 = vadd.f32 %v1432, 1.0
        %v1471 = vadd.f32 %v1434, 1.0
        %v1472 = vadd.f32 %v1436, 1.0
        %v1473 = vadd.f32 %v1438, 1.0
        %v1474 = vadd.f32 %v1440, 1.0
        %v1475 = vadd.f32 %v1442, 1.0
        %v1476 = vadd.f32 %v1444, 1.0
        %v1477 = vrcp.pop %v1445
        %v1478 = vmul.f32 1.0, %v1477
        %v1479 = vrcp.pop %v1446
        %v1480 = vmul.f32 1.0, %v1479
        %v1481 = vrcp.pop %v1447
        %v1482 = vmul.f32 1.0, %v1481
        %v1483 = vrcp.pop %v1448
        %v1484 = vmul.f32 1.0, %v1483
        %v1485 = vrcp.pop %v1449
        %v1486 = vmul.f32 1.0, %v1485
        %v1487 = vrcp.pop %v1450
        %v1488 = vmul.f32 1.0, %v1487
        %v1489 = vrcp.pop %v1451
        %v1490 = vmul.f32 1.0, %v1489
        %v1491 = vrcp.pop %v1452
        %v1492 = vmul.f32 1.0, %v1491
        %v1493 = vrcp.pop %v1453
        %v1494 = vmul.f32 1.0, %v1493
        %v1495 = vrcp.pop %v1454
        %v1496 = vmul.f32 1.0, %v1495
        %v1497 = vrcp.pop %v1455
        %v1498 = vmul.f32 1.0, %v1497
        %v1499 = vrcp.pop %v1456
        %v1500 = vmul.f32 1.0, %v1499
        %v1501 = vrcp.pop %v1457
        %v1502 = vmul.f32 1.0, %v1501
        %v1503 = vrcp.pop %v1458
        %v1504 = vmul.f32 1.0, %v1503
        %v1505 = vrcp.pop %v1459
        %v1506 = vmul.f32 1.0, %v1505
        %v1507 = vrcp.pop %v1460
        %v1508 = vmul.f32 1.0, %v1507
        %v1509 = vrcp.pop %v1461
        %v1510 = vmul.f32 1.0, %v1509
        %v1511 = vrcp.pop %v1462
        %v1512 = vmul.f32 1.0, %v1511
        %v1513 = vrcp.pop %v1463
        %v1514 = vmul.f32 1.0, %v1513
        %v1515 = vrcp.pop %v1464
        %v1516 = vmul.f32 1.0, %v1515
        %v1517 = vrcp.pop %v1465
        %v1518 = vmul.f32 1.0, %v1517
        %v1519 = vrcp.pop %v1466
        %v1520 = vmul.f32 1.0, %v1519
        %v1521 = vrcp.pop %v1467
        %v1522 = vmul.f32 1.0, %v1521
        %v1523 = vrcp.pop %v1468
        %v1524 = vmul.f32 1.0, %v1523
        %v1525 = vrcp.pop %v1469
        %v1526 = vmul.f32 1.0, %v1525
        %v1527 = vrcp.pop %v1470
        %v1528 = vmul.f32 1.0, %v1527
        %v1529 = vrcp.pop %v1471
        %v1530 = vmul.f32 1.0, %v1529
        %v1531 = vrcp.pop %v1472
        %v1532 = vmul.f32 1.0, %v1531
        %v1533 = vrcp.pop %v1473
        %v1534 = vmul.f32 1.0, %v1533
        %v1535 = vrcp.pop %v1474
        %v1536 = vmul.f32 1.0, %v1535
        %v1537 = vrcp.pop %v1475
        %v1538 = vmul.f32 1.0, %v1537
        %v1539 = vrcp.pop %v1476
        %v1540 = vmul.f32 1.0, %v1539
        %v1541 = vld [vmem:[%s5] sm:$0xf]
        %v1542 = vld [vmem:[%s5 + $0x4] sm:$0xf]
        %v1543 = vld [vmem:[%s5 + $0x8] sm:$0xf]
        %v1544 = vld [vmem:[%s5 + $0xc] sm:$0xf]
        %v1545 = vld [vmem:[%s5 + $0x10] sm:$0xf]
        %v1546 = vld [vmem:[%s5 + $0x14] sm:$0xf]
        %v1547 = vld [vmem:[%s5 + $0x18] sm:$0xf]
        %v1548 = vld [vmem:[%s5 + $0x1c] sm:$0xf]
        %v1549 = vlaneseq
        %v1550 = vshrl.u32 %v1549, 7
        %v1551 = vsub.s32 0, %v1550
        %v1552 = vrot.slane %v415, %v1551
        %v1585 = vunpack.c.l.b16 %v347
        %v1586 = vunpack.c.l.b16 %v348
        %v1587 = vunpack.c.l.b16 %v349
        %v1588 = vunpack.c.l.b16 %v350
        %v1589 = vunpack.c.l.b16 %v351
        %v1590 = vunpack.c.l.b16 %v352
        %v1591 = vunpack.c.l.b16 %v353
        %v1592 = vunpack.c.l.b16 %v354
        %v1593 = vunpack.c.l.b16 %v355
        %v1594 = vunpack.c.l.b16 %v356
        %v1595 = vunpack.c.l.b16 %v357
        %v1596 = vunpack.c.l.b16 %v358
        %v1597 = vunpack.c.l.b16 %v359
        %v1598 = vunpack.c.l.b16 %v360
        %v1599 = vunpack.c.l.b16 %v361
        %v1600 = vunpack.c.l.b16 %v362
        %v1601 = vunpack.c.l.b16 %v363
        %v1602 = vunpack.c.l.b16 %v364
        %v1603 = vunpack.c.l.b16 %v365
        %v1604 = vunpack.c.l.b16 %v366
        %v1605 = vunpack.c.l.b16 %v367
        %v1606 = vunpack.c.l.b16 %v368
        %v1607 = vunpack.c.l.b16 %v369
        %v1608 = vunpack.c.l.b16 %v370
        %v1609 = vunpack.c.l.b16 %v371
        %v1610 = vunpack.c.l.b16 %v372
        %v1611 = vunpack.c.l.b16 %v373
        %v1612 = vunpack.c.l.b16 %v374
        %v1613 = vunpack.c.l.b16 %v375
        %v1614 = vunpack.c.l.b16 %v376
        %v1615 = vunpack.c.l.b16 %v377
        %v1616 = vunpack.c.l.b16 %v378
        %v1617 = vpack.c.b16 %v1586, %v1585
        %v1618 = vpack.c.b16 %v1588, %v1587
        %v1619 = vpack.c.b16 %v1590, %v1589
        %v1620 = vpack.c.b16 %v1592, %v1591
        %v1621 = vpack.c.b16 %v1594, %v1593
        %v1622 = vpack.c.b16 %v1596, %v1595
        %v1623 = vpack.c.b16 %v1598, %v1597
        %v1624 = vpack.c.b16 %v1600, %v1599
        %v1625 = vpack.c.b16 %v1602, %v1601
        %v1626 = vpack.c.b16 %v1604, %v1603
        %v1627 = vpack.c.b16 %v1606, %v1605
        %v1628 = vpack.c.b16 %v1608, %v1607
        %v1629 = vpack.c.b16 %v1610, %v1609
        %v1630 = vpack.c.b16 %v1612, %v1611
        %v1631 = vpack.c.b16 %v1614, %v1613
        %v1632 = vpack.c.b16 %v1616, %v1615
        %v1641 = vunpack.c.l.b16 %v1541
        %v1642 = vunpack.c.l.b16 %v1542
        %v1643 = vunpack.c.l.b16 %v1543
        %v1644 = vunpack.c.l.b16 %v1544
        %v1645 = vunpack.c.l.b16 %v1545
        %v1646 = vunpack.c.l.b16 %v1546
        %v1647 = vunpack.c.l.b16 %v1547
        %v1648 = vunpack.c.l.b16 %v1548
        %v1649 = vpack.c.b16 %v1642, %v1641
        %v1650 = vpack.c.b16 %v1644, %v1643
        %v1651 = vpack.c.b16 %v1646, %v1645
        %v1652 = vpack.c.b16 %v1648, %v1647
        %v1658 = vsel %vm939, %v1617, 0
        %v1661 = vsel %vm939, %v1618, 0
        %v1664 = vsel %vm939, %v1619, 0
        %v1667 = vsel %vm939, %v1620, 0
        %v1670 = vsel %vm939, %v1621, 0
        %v1673 = vsel %vm939, %v1622, 0
        %v1676 = vsel %vm939, %v1623, 0
        %v1679 = vsel %vm939, %v1624, 0
        %v1682 = vsel %vm939, %v1625, 0
        %v1685 = vsel %vm939, %v1626, 0
        %v1688 = vsel %vm939, %v1627, 0
        %v1691 = vsel %vm939, %v1628, 0
        %v1694 = vsel %vm939, %v1629, 0
        %v1697 = vsel %vm939, %v1630, 0
        %v1700 = vsel %vm939, %v1631, 0
        %v1703 = vsel %vm939, %v1632, 0
        %1705 = vmatprep.subr.bf16.mxu0 0
        %1706 = vmatpush1.bf16.msra.mxu0 %v1649
        %1707 = vmatprep.subr.bf16.mxu0 0
        %1708 = vmatpush1.bf16.msra.mxu0 %v1650
        %1709 = vmatprep.subr.bf16.mxu0 0
        %1710 = vmatpush1.bf16.msra.mxu0 %v1651
        %1711 = vmatprep.subr.bf16.mxu0 0
        %1712 = vmatpush1.bf16.msra.mxu0 %v1652
        %1713 = vmatprep.subr.bf16.mxu0 0
        %1714 = vmatpush1.bf16.msra.mxu0 0
        %1715 = vmatprep.subr.bf16.mxu0 0
        %1716 = vmatpush1.bf16.msra.mxu0 0
        %1717 = vmatprep.subr.bf16.mxu0 0
        %1718 = vmatpush1.bf16.msra.mxu0 0
        %1719 = vmatprep.subr.bf16.mxu0 0
        %1720 = vmatpush1.bf16.msra.mxu0 0
        %1721 = vmatprep.subr.bf16.mxu0 0
        %1722 = vmatpush1.bf16.msra.mxu0 0
        %1723 = vmatprep.subr.bf16.mxu0 0
        %1724 = vmatpush1.bf16.msra.mxu0 0
        %1725 = vmatprep.subr.bf16.mxu0 0
        %1726 = vmatpush1.bf16.msra.mxu0 0
        %1727 = vmatprep.subr.bf16.mxu0 0
        %1728 = vmatpush1.bf16.msra.mxu0 0
        %1729 = vmatprep.subr.bf16.mxu0 0
        %1730 = vmatpush1.bf16.msra.mxu0 0
        %1731 = vmatprep.subr.bf16.mxu0 0
        %1732 = vmatpush1.bf16.msra.mxu0 0
        %1733 = vmatprep.subr.bf16.mxu0 0
        %1734 = vmatpush1.bf16.msra.mxu0 0
        %1735 = vmatprep.subr.bf16.mxu0 0
        %1736 = vmatpush1.bf16.msra.mxu0 0
        %1737 = vmatprep.mubr.bf16.mxu0 0
        %1738 = vmatmul.mubr.bf16.gmra.mrb[0].mxu0 %v1658
        %v1739 = vpop.f32.mrb[0].mxu0
        %v1740 = vadd.f32 %v1552, %v1739
        %v1741 = vpop.f32.mrb[0].mxu0
        %v1742 = vpop.f32.mrb[0].mxu0
        %v1743 = vadd.f32 %v1552, %v1742
        %v1744 = vpop.f32.mrb[0].mxu0
        %1745 = vmatprep.mubr.bf16.mxu0 0
        %1746 = vmatmul.mubr.bf16.gmra.mrb[0].mxu0 %v1661
        %v1747 = vpop.f32.mrb[0].mxu0
        %v1748 = vadd.f32 %v1552, %v1747
        %v1749 = vpop.f32.mrb[0].mxu0
        %v1750 = vpop.f32.mrb[0].mxu0
        %v1751 = vadd.f32 %v1552, %v1750
        %v1752 = vpop.f32.mrb[0].mxu0
        %1753 = vmatprep.mubr.bf16.mxu0 0
        %1754 = vmatmul.mubr.bf16.gmra.mrb[0].mxu0 %v1664
        %v1755 = vpop.f32.mrb[0].mxu0
        %v1756 = vadd.f32 %v1552, %v1755
        %v1757 = vpop.f32.mrb[0].mxu0
        %v1758 = vpop.f32.mrb[0].mxu0
        %v1759 = vadd.f32 %v1552, %v1758
        %v1760 = vpop.f32.mrb[0].mxu0
        %1761 = vmatprep.mubr.bf16.mxu0 0
        %1762 = vmatmul.mubr.bf16.gmra.mrb[0].mxu0 %v1667
        %v1763 = vpop.f32.mrb[0].mxu0
        %v1764 = vadd.f32 %v1552, %v1763
        %v1765 = vpop.f32.mrb[0].mxu0
        %v1766 = vpop.f32.mrb[0].mxu0
        %v1767 = vadd.f32 %v1552, %v1766
        %v1768 = vpop.f32.mrb[0].mxu0
        %1769 = vmatprep.mubr.bf16.mxu0 0
        %1770 = vmatmul.mubr.bf16.gmra.mrb[0].mxu0 %v1670
        %v1771 = vpop.f32.mrb[0].mxu0
        %v1772 = vadd.f32 %v1552, %v1771
        %v1773 = vpop.f32.mrb[0].mxu0
        %v1774 = vpop.f32.mrb[0].mxu0
        %v1775 = vadd.f32 %v1552, %v1774
        %v1776 = vpop.f32.mrb[0].mxu0
        %1777 = vmatprep.mubr.bf16.mxu0 0
        %1778 = vmatmul.mubr.bf16.gmra.mrb[0].mxu0 %v1673
        %v1779 = vpop.f32.mrb[0].mxu0
        %v1780 = vadd.f32 %v1552, %v1779
        %v1781 = vpop.f32.mrb[0].mxu0
        %v1782 = vpop.f32.mrb[0].mxu0
        %v1783 = vadd.f32 %v1552, %v1782
        %v1784 = vpop.f32.mrb[0].mxu0
        %1785 = vmatprep.mubr.bf16.mxu0 0
        %1786 = vmatmul.mubr.bf16.gmra.mrb[0].mxu0 %v1676
        %v1787 = vpop.f32.mrb[0].mxu0
        %v1788 = vadd.f32 %v1552, %v1787
        %v1789 = vpop.f32.mrb[0].mxu0
        %v1790 = vpop.f32.mrb[0].mxu0
        %v1791 = vadd.f32 %v1552, %v1790
        %v1792 = vpop.f32.mrb[0].mxu0
        %1793 = vmatprep.mubr.bf16.mxu0 0
        %1794 = vmatmul.mubr.bf16.gmra.mrb[0].mxu0 %v1679
        %v1795 = vpop.f32.mrb[0].mxu0
        %v1796 = vadd.f32 %v1552, %v1795
        %v1797 = vpop.f32.mrb[0].mxu0
        %v1798 = vpop.f32.mrb[0].mxu0
        %v1799 = vadd.f32 %v1552, %v1798
        %v1800 = vpop.f32.mrb[0].mxu0
        %1801 = vmatprep.mubr.bf16.mxu0 0
        %1802 = vmatmul.mubr.bf16.gmra.mrb[0].mxu0 %v1682
        %v1803 = vpop.f32.mrb[0].mxu0
        %v1804 = vadd.f32 %v1552, %v1803
        %v1805 = vpop.f32.mrb[0].mxu0
        %v1806 = vpop.f32.mrb[0].mxu0
        %v1807 = vadd.f32 %v1552, %v1806
        %v1808 = vpop.f32.mrb[0].mxu0
        %1809 = vmatprep.mubr.bf16.mxu0 0
        %1810 = vmatmul.mubr.bf16.gmra.mrb[0].mxu0 %v1685
        %v1811 = vpop.f32.mrb[0].mxu0
        %v1812 = vadd.f32 %v1552, %v1811
        %v1813 = vpop.f32.mrb[0].mxu0
        %v1814 = vpop.f32.mrb[0].mxu0
        %v1815 = vadd.f32 %v1552, %v1814
        %v1816 = vpop.f32.mrb[0].mxu0
        %1817 = vmatprep.mubr.bf16.mxu0 0
        %1818 = vmatmul.mubr.bf16.gmra.mrb[0].mxu0 %v1688
        %v1819 = vpop.f32.mrb[0].mxu0
        %v1820 = vadd.f32 %v1552, %v1819
        %v1821 = vpop.f32.mrb[0].mxu0
        %v1822 = vpop.f32.mrb[0].mxu0
        %v1823 = vadd.f32 %v1552, %v1822
        %v1824 = vpop.f32.mrb[0].mxu0
        %1825 = vmatprep.mubr.bf16.mxu0 0
        %1826 = vmatmul.mubr.bf16.gmra.mrb[0].mxu0 %v1691
        %v1827 = vpop.f32.mrb[0].mxu0
        %v1828 = vadd.f32 %v1552, %v1827
        %v1829 = vpop.f32.mrb[0].mxu0
        %v1830 = vpop.f32.mrb[0].mxu0
        %v1831 = vadd.f32 %v1552, %v1830
        %v1832 = vpop.f32.mrb[0].mxu0
        %1833 = vmatprep.mubr.bf16.mxu0 0
        %1834 = vmatmul.mubr.bf16.gmra.mrb[0].mxu0 %v1694
        %v1835 = vpop.f32.mrb[0].mxu0
        %v1836 = vadd.f32 %v1552, %v1835
        %v1837 = vpop.f32.mrb[0].mxu0
        %v1838 = vpop.f32.mrb[0].mxu0
        %v1839 = vadd.f32 %v1552, %v1838
        %v1840 = vpop.f32.mrb[0].mxu0
        %1841 = vmatprep.mubr.bf16.mxu0 0
        %1842 = vmatmul.mubr.bf16.gmra.mrb[0].mxu0 %v1697
        %v1843 = vpop.f32.mrb[0].mxu0
        %v1844 = vadd.f32 %v1552, %v1843
        %v1845 = vpop.f32.mrb[0].mxu0
        %v1846 = vpop.f32.mrb[0].mxu0
        %v1847 = vadd.f32 %v1552, %v1846
        %v1848 = vpop.f32.mrb[0].mxu0
        %1849 = vmatprep.mubr.bf16.mxu0 0
        %1850 = vmatmul.mubr.bf16.gmra.mrb[0].mxu0 %v1700
        %v1851 = vpop.f32.mrb[0].mxu0
        %v1852 = vadd.f32 %v1552, %v1851
        %v1853 = vpop.f32.mrb[0].mxu0
        %v1854 = vpop.f32.mrb[0].mxu0
        %v1855 = vadd.f32 %v1552, %v1854
        %v1856 = vpop.f32.mrb[0].mxu0
        %1857 = vmatprep.mubr.bf16.mxu0 0
        %1858 = vmatmul.mubr.bf16.gmra.mrb[0].mxu0 %v1703
        %v1859 = vpop.f32.mrb[0].mxu0
        %v1860 = vadd.f32 %v1552, %v1859
        %v1861 = vpop.f32.mrb[0].mxu0
        %v1862 = vpop.f32.mrb[0].mxu0
        %v1863 = vadd.f32 %v1552, %v1862
        %v1864 = vpop.f32.mrb[0].mxu0
        %1865 = vdwg.mxu0
        %v1866 = vmax.f32 %v1740, 0.0
        %v1867 = vmax.f32 %v1743, 0.0
        %v1868 = vmax.f32 %v1748, 0.0
        %v1869 = vmax.f32 %v1751, 0.0
        %v1870 = vmax.f32 %v1756, 0.0
        %v1871 = vmax.f32 %v1759, 0.0
        %v1872 = vmax.f32 %v1764, 0.0
        %v1873 = vmax.f32 %v1767, 0.0
        %v1874 = vmax.f32 %v1772, 0.0
        %v1875 = vmax.f32 %v1775, 0.0
        %v1876 = vmax.f32 %v1780, 0.0
        %v1877 = vmax.f32 %v1783, 0.0
        %v1878 = vmax.f32 %v1788, 0.0
        %v1879 = vmax.f32 %v1791, 0.0
        %v1880 = vmax.f32 %v1796, 0.0
        %v1881 = vmax.f32 %v1799, 0.0
        %v1882 = vmax.f32 %v1804, 0.0
        %v1883 = vmax.f32 %v1807, 0.0
        %v1884 = vmax.f32 %v1812, 0.0
        %v1885 = vmax.f32 %v1815, 0.0
        %v1886 = vmax.f32 %v1820, 0.0
        %v1887 = vmax.f32 %v1823, 0.0
        %v1888 = vmax.f32 %v1828, 0.0
        %v1889 = vmax.f32 %v1831, 0.0
        %v1890 = vmax.f32 %v1836, 0.0
        %v1891 = vmax.f32 %v1839, 0.0
        %v1892 = vmax.f32 %v1844, 0.0
        %v1893 = vmax.f32 %v1847, 0.0
        %v1894 = vmax.f32 %v1852, 0.0
        %v1895 = vmax.f32 %v1855, 0.0
        %v1896 = vmax.f32 %v1860, 0.0
        %v1897 = vmax.f32 %v1863, 0.0
        %v1898 = vpack.c.bf16 %v1867, %v1866
        %v1899 = vpack.c.bf16 %v1869, %v1868
        %v1900 = vpack.c.bf16 %v1871, %v1870
        %v1901 = vpack.c.bf16 %v1873, %v1872
        %v1902 = vpack.c.bf16 %v1875, %v1874
        %v1903 = vpack.c.bf16 %v1877, %v1876
        %v1904 = vpack.c.bf16 %v1879, %v1878
        %v1905 = vpack.c.bf16 %v1881, %v1880
        %v1906 = vpack.c.bf16 %v1883, %v1882
        %v1907 = vpack.c.bf16 %v1885, %v1884
        %v1908 = vpack.c.bf16 %v1887, %v1886
        %v1909 = vpack.c.bf16 %v1889, %v1888
        %v1910 = vpack.c.bf16 %v1891, %v1890
        %v1911 = vpack.c.bf16 %v1893, %v1892
        %v1912 = vpack.c.bf16 %v1895, %v1894
        %v1913 = vpack.c.bf16 %v1897, %v1896
        %v1914 = vld [vmem:[%s6] sm:$0xf]
        %v1915 = vld [vmem:[%s6 + $0x4] sm:$0xf]
        %v1916 = vld [vmem:[%s6 + $0x8] sm:$0xf]
        %v1917 = vld [vmem:[%s6 + $0xc] sm:$0xf]
        %v1918 = vld [vmem:[%s6 + $0x10] sm:$0xf]
        %v1919 = vld [vmem:[%s6 + $0x14] sm:$0xf]
        %v1920 = vld [vmem:[%s6 + $0x18] sm:$0xf]
        %v1921 = vld [vmem:[%s6 + $0x1c] sm:$0xf]
        %v1922 = vld [vmem:[%s6 + $0x20] sm:$0xf]
        %v1923 = vld [vmem:[%s6 + $0x24] sm:$0xf]
        %v1924 = vld [vmem:[%s6 + $0x28] sm:$0xf]
        %v1925 = vld [vmem:[%s6 + $0x2c] sm:$0xf]
        %v1938 = vunpack.c.l.b16 %v1914
        %v1939 = vunpack.c.l.b16 %v1915
        %v1940 = vunpack.c.l.b16 %v1916
        %v1941 = vunpack.c.l.b16 %v1917
        %v1942 = vunpack.c.l.b16 %v1918
        %v1943 = vunpack.c.l.b16 %v1919
        %v1944 = vunpack.c.l.b16 %v1920
        %v1945 = vunpack.c.l.b16 %v1921
        %v1946 = vunpack.c.l.b16 %v1922
        %v1947 = vunpack.c.l.b16 %v1923
        %v1948 = vunpack.c.l.b16 %v1924
        %v1949 = vunpack.c.l.b16 %v1925
        %v1950 = vpack.c.b16 %v1939, %v1938
        %v1951 = vpack.c.b16 %v1941, %v1940
        %v1952 = vpack.c.b16 %v1943, %v1942
        %v1953 = vpack.c.b16 %v1945, %v1944
        %v1954 = vpack.c.b16 %v1947, %v1946
        %v1955 = vpack.c.b16 %v1949, %v1948
        %v1963 = vsel %vm681, %v1898, 0
        %v1966 = vsel %vm681, %v1899, 0
        %v1969 = vsel %vm681, %v1900, 0
        %v1972 = vsel %vm681, %v1901, 0
        %v1975 = vsel %vm681, %v1902, 0
        %v1978 = vsel %vm681, %v1903, 0
        %v1981 = vsel %vm681, %v1904, 0
        %v1984 = vsel %vm681, %v1905, 0
        %v1987 = vsel %vm681, %v1906, 0
        %v1990 = vsel %vm681, %v1907, 0
        %v1993 = vsel %vm681, %v1908, 0
        %v1996 = vsel %vm681, %v1909, 0
        %v1999 = vsel %vm681, %v1910, 0
        %v2002 = vsel %vm681, %v1911, 0
        %v2005 = vsel %vm681, %v1912, 0
        %v2008 = vsel %vm681, %v1913, 0
        %2010 = vmatprep.subr.bf16.mxu0 0
        %2011 = vmatpush1.bf16.msra.mxu0 %v1950
        %2012 = vmatprep.subr.bf16.mxu0 0
        %2013 = vmatpush1.bf16.msra.mxu0 %v1951
        %2014 = vmatprep.subr.bf16.mxu0 0
        %2015 = vmatpush1.bf16.msra.mxu0 %v1952
        %2016 = vmatprep.subr.bf16.mxu0 0
        %2017 = vmatpush1.bf16.msra.mxu0 %v1953
        %2018 = vmatprep.subr.bf16.mxu0 0
        %2019 = vmatpush1.bf16.msra.mxu0 %v1954
        %2020 = vmatprep.subr.bf16.mxu0 0
        %2021 = vmatpush1.bf16.msra.mxu0 %v1955
        %2022 = vmatprep.subr.bf16.mxu0 0
        %2023 = vmatpush1.bf16.msra.mxu0 0
        %2024 = vmatprep.subr.bf16.mxu0 0
        %2025 = vmatpush1.bf16.msra.mxu0 0
        %2026 = vmatprep.subr.bf16.mxu0 0
        %2027 = vmatpush1.bf16.msra.mxu0 0
        %2028 = vmatprep.subr.bf16.mxu0 0
        %2029 = vmatpush1.bf16.msra.mxu0 0
        %2030 = vmatprep.subr.bf16.mxu0 0
        %2031 = vmatpush1.bf16.msra.mxu0 0
        %2032 = vmatprep.subr.bf16.mxu0 0
        %2033 = vmatpush1.bf16.msra.mxu0 0
        %2034 = vmatprep.subr.bf16.mxu0 0
        %2035 = vmatpush1.bf16.msra.mxu0 0
        %2036 = vmatprep.subr.bf16.mxu0 0
        %2037 = vmatpush1.bf16.msra.mxu0 0
        %2038 = vmatprep.subr.bf16.mxu0 0
        %2039 = vmatpush1.bf16.msra.mxu0 0
        %2040 = vmatprep.subr.bf16.mxu0 0
        %2041 = vmatpush1.bf16.msra.mxu0 0
        %2042 = vmatprep.mubr.bf16.mxu0 0
        %2043 = vmatmul.mubr.bf16.gmra.mrb[0].mxu0 %v1963
        %v2044 = vpop.f32.mrb[0].mxu0
        %v2045 = vadd.f32 0.0, %v2044
        %v2046 = vpop.f32.mrb[0].mxu0
        %v2047 = vpop.f32.mrb[0].mxu0
        %v2048 = vadd.f32 0.0, %v2047
        %v2049 = vpop.f32.mrb[0].mxu0
        %2050 = vmatprep.mubr.bf16.mxu0 0
        %2051 = vmatmul.mubr.bf16.gmra.mrb[0].mxu0 %v1966
        %v2052 = vpop.f32.mrb[0].mxu0
        %v2053 = vadd.f32 0.0, %v2052
        %v2054 = vpop.f32.mrb[0].mxu0
        %v2055 = vpop.f32.mrb[0].mxu0
        %v2056 = vadd.f32 0.0, %v2055
        %v2057 = vpop.f32.mrb[0].mxu0
        %2058 = vmatprep.mubr.bf16.mxu0 0
        %2059 = vmatmul.mubr.bf16.gmra.mrb[0].mxu0 %v1969
        %v2060 = vpop.f32.mrb[0].mxu0
        %v2061 = vadd.f32 0.0, %v2060
        %v2062 = vpop.f32.mrb[0].mxu0
        %v2063 = vpop.f32.mrb[0].mxu0
        %v2064 = vadd.f32 0.0, %v2063
        %v2065 = vpop.f32.mrb[0].mxu0
        %2066 = vmatprep.mubr.bf16.mxu0 0
        %2067 = vmatmul.mubr.bf16.gmra.mrb[0].mxu0 %v1972
        %v2068 = vpop.f32.mrb[0].mxu0
        %v2069 = vadd.f32 0.0, %v2068
        %v2070 = vpop.f32.mrb[0].mxu0
        %v2071 = vpop.f32.mrb[0].mxu0
        %v2072 = vadd.f32 0.0, %v2071
        %v2073 = vpop.f32.mrb[0].mxu0
        %2074 = vmatprep.mubr.bf16.mxu0 0
        %2075 = vmatmul.mubr.bf16.gmra.mrb[0].mxu0 %v1975
        %v2076 = vpop.f32.mrb[0].mxu0
        %v2077 = vadd.f32 0.0, %v2076
        %v2078 = vpop.f32.mrb[0].mxu0
        %v2079 = vpop.f32.mrb[0].mxu0
        %v2080 = vadd.f32 0.0, %v2079
        %v2081 = vpop.f32.mrb[0].mxu0
        %2082 = vmatprep.mubr.bf16.mxu0 0
        %2083 = vmatmul.mubr.bf16.gmra.mrb[0].mxu0 %v1978
        %v2084 = vpop.f32.mrb[0].mxu0
        %v2085 = vadd.f32 0.0, %v2084
        %v2086 = vpop.f32.mrb[0].mxu0
        %v2087 = vpop.f32.mrb[0].mxu0
        %v2088 = vadd.f32 0.0, %v2087
        %v2089 = vpop.f32.mrb[0].mxu0
        %2090 = vmatprep.mubr.bf16.mxu0 0
        %2091 = vmatmul.mubr.bf16.gmra.mrb[0].mxu0 %v1981
        %v2092 = vpop.f32.mrb[0].mxu0
        %v2093 = vadd.f32 0.0, %v2092
        %v2094 = vpop.f32.mrb[0].mxu0
        %v2095 = vpop.f32.mrb[0].mxu0
        %v2096 = vadd.f32 0.0, %v2095
        %v2097 = vpop.f32.mrb[0].mxu0
        %2098 = vmatprep.mubr.bf16.mxu0 0
        %2099 = vmatmul.mubr.bf16.gmra.mrb[0].mxu0 %v1984
        %v2100 = vpop.f32.mrb[0].mxu0
        %v2101 = vadd.f32 0.0, %v2100
        %v2102 = vpop.f32.mrb[0].mxu0
        %v2103 = vpop.f32.mrb[0].mxu0
        %v2104 = vadd.f32 0.0, %v2103
        %v2105 = vpop.f32.mrb[0].mxu0
        %2106 = vmatprep.mubr.bf16.mxu0 0
        %2107 = vmatmul.mubr.bf16.gmra.mrb[0].mxu0 %v1987
        %v2108 = vpop.f32.mrb[0].mxu0
        %v2109 = vadd.f32 0.0, %v2108
        %v2110 = vpop.f32.mrb[0].mxu0
        %v2111 = vpop.f32.mrb[0].mxu0
        %v2112 = vadd.f32 0.0, %v2111
        %v2113 = vpop.f32.mrb[0].mxu0
        %2114 = vmatprep.mubr.bf16.mxu0 0
        %2115 = vmatmul.mubr.bf16.gmra.mrb[0].mxu0 %v1990
        %v2116 = vpop.f32.mrb[0].mxu0
        %v2117 = vadd.f32 0.0, %v2116
        %v2118 = vpop.f32.mrb[0].mxu0
        %v2119 = vpop.f32.mrb[0].mxu0
        %v2120 = vadd.f32 0.0, %v2119
        %v2121 = vpop.f32.mrb[0].mxu0
        %2122 = vmatprep.mubr.bf16.mxu0 0
        %2123 = vmatmul.mubr.bf16.gmra.mrb[0].mxu0 %v1993
        %v2124 = vpop.f32.mrb[0].mxu0
        %v2125 = vadd.f32 0.0, %v2124
        %v2126 = vpop.f32.mrb[0].mxu0
        %v2127 = vpop.f32.mrb[0].mxu0
        %v2128 = vadd.f32 0.0, %v2127
        %v2129 = vpop.f32.mrb[0].mxu0
        %2130 = vmatprep.mubr.bf16.mxu0 0
        %2131 = vmatmul.mubr.bf16.gmra.mrb[0].mxu0 %v1996
        %v2132 = vpop.f32.mrb[0].mxu0
        %v2133 = vadd.f32 0.0, %v2132
        %v2134 = vpop.f32.mrb[0].mxu0
        %v2135 = vpop.f32.mrb[0].mxu0
        %v2136 = vadd.f32 0.0, %v2135
        %v2137 = vpop.f32.mrb[0].mxu0
        %2138 = vmatprep.mubr.bf16.mxu0 0
        %2139 = vmatmul.mubr.bf16.gmra.mrb[0].mxu0 %v1999
        %v2140 = vpop.f32.mrb[0].mxu0
        %v2141 = vadd.f32 0.0, %v2140
        %v2142 = vpop.f32.mrb[0].mxu0
        %v2143 = vpop.f32.mrb[0].mxu0
        %v2144 = vadd.f32 0.0, %v2143
        %v2145 = vpop.f32.mrb[0].mxu0
        %2146 = vmatprep.mubr.bf16.mxu0 0
        %2147 = vmatmul.mubr.bf16.gmra.mrb[0].mxu0 %v2002
        %v2148 = vpop.f32.mrb[0].mxu0
        %v2149 = vadd.f32 0.0, %v2148
        %v2150 = vpop.f32.mrb[0].mxu0
        %v2151 = vpop.f32.mrb[0].mxu0
        %v2152 = vadd.f32 0.0, %v2151
        %v2153 = vpop.f32.mrb[0].mxu0
        %2154 = vmatprep.mubr.bf16.mxu0 0
        %2155 = vmatmul.mubr.bf16.gmra.mrb[0].mxu0 %v2005
        %v2156 = vpop.f32.mrb[0].mxu0
        %v2157 = vadd.f32 0.0, %v2156
        %v2158 = vpop.f32.mrb[0].mxu0
        %v2159 = vpop.f32.mrb[0].mxu0
        %v2160 = vadd.f32 0.0, %v2159
        %v2161 = vpop.f32.mrb[0].mxu0
        %2162 = vmatprep.mubr.bf16.mxu0 0
        %2163 = vmatmul.mubr.bf16.gmra.mrb[0].mxu0 %v2008
        %v2164 = vpop.f32.mrb[0].mxu0
        %v2165 = vadd.f32 0.0, %v2164
        %v2166 = vpop.f32.mrb[0].mxu0
        %v2167 = vpop.f32.mrb[0].mxu0
        %v2168 = vadd.f32 0.0, %v2167
        %v2169 = vpop.f32.mrb[0].mxu0
        %2170 = vdwg.mxu0
        %v2171 = vmul.f32 %v1478, %v2045
        %v2172 = vmul.f32 %v1480, %v2048
        %v2173 = vmul.f32 %v1482, %v2053
        %v2174 = vmul.f32 %v1484, %v2056
        %v2175 = vmul.f32 %v1486, %v2061
        %v2176 = vmul.f32 %v1488, %v2064
        %v2177 = vmul.f32 %v1490, %v2069
        %v2178 = vmul.f32 %v1492, %v2072
        %v2179 = vmul.f32 %v1494, %v2077
        %v2180 = vmul.f32 %v1496, %v2080
        %v2181 = vmul.f32 %v1498, %v2085
        %v2182 = vmul.f32 %v1500, %v2088
        %v2183 = vmul.f32 %v1502, %v2093
        %v2184 = vmul.f32 %v1504, %v2096
        %v2185 = vmul.f32 %v1506, %v2101
        %v2186 = vmul.f32 %v1508, %v2104
        %v2187 = vmul.f32 %v1510, %v2109
        %v2188 = vmul.f32 %v1512, %v2112
        %v2189 = vmul.f32 %v1514, %v2117
        %v2190 = vmul.f32 %v1516, %v2120
        %v2191 = vmul.f32 %v1518, %v2125
        %v2192 = vmul.f32 %v1520, %v2128
        %v2193 = vmul.f32 %v1522, %v2133
        %v2194 = vmul.f32 %v1524, %v2136
        %v2195 = vmul.f32 %v1526, %v2141
        %v2196 = vmul.f32 %v1528, %v2144
        %v2197 = vmul.f32 %v1530, %v2149
        %v2198 = vmul.f32 %v1532, %v2152
        %v2199 = vmul.f32 %v1534, %v2157
        %v2200 = vmul.f32 %v1536, %v2160
        %v2201 = vmul.f32 %v1538, %v2165
        %v2202 = vmul.f32 %v1540, %v2168
        %v2203 = vadd.f32 %v765, %v2171
        %v2204 = vadd.f32 %v768, %v2172
        %v2205 = vadd.f32 %v773, %v2173
        %v2206 = vadd.f32 %v776, %v2174
        %v2207 = vadd.f32 %v781, %v2175
        %v2208 = vadd.f32 %v784, %v2176
        %v2209 = vadd.f32 %v789, %v2177
        %v2210 = vadd.f32 %v792, %v2178
        %v2211 = vadd.f32 %v797, %v2179
        %v2212 = vadd.f32 %v800, %v2180
        %v2213 = vadd.f32 %v805, %v2181
        %v2214 = vadd.f32 %v808, %v2182
        %v2215 = vadd.f32 %v813, %v2183
        %v2216 = vadd.f32 %v816, %v2184
        %v2217 = vadd.f32 %v821, %v2185
        %v2218 = vadd.f32 %v824, %v2186
        %v2219 = vadd.f32 %v829, %v2187
        %v2220 = vadd.f32 %v832, %v2188
        %v2221 = vadd.f32 %v837, %v2189
        %v2222 = vadd.f32 %v840, %v2190
        %v2223 = vadd.f32 %v845, %v2191
        %v2224 = vadd.f32 %v848, %v2192
        %v2225 = vadd.f32 %v853, %v2193
        %v2226 = vadd.f32 %v856, %v2194
        %v2227 = vadd.f32 %v861, %v2195
        %v2228 = vadd.f32 %v864, %v2196
        %v2229 = vadd.f32 %v869, %v2197
        %v2230 = vadd.f32 %v872, %v2198
        %v2231 = vadd.f32 %v877, %v2199
        %v2232 = vadd.f32 %v880, %v2200
        %v2233 = vadd.f32 %v885, %v2201
        %v2234 = vadd.f32 %v888, %v2202
        %v2235 = vlaneseq
        %v2236 = vshrl.u32 %v2235, 7
        %v2237 = vsub.s32 0, %v2236
        %v2238 = vrot.slane %v416, %v2237
        %v2239 = vadd.f32 %v2203, %v2238
        %v2240 = vadd.f32 %v2204, %v2238
        %v2241 = vadd.f32 %v2205, %v2238
        %v2242 = vadd.f32 %v2206, %v2238
        %v2243 = vadd.f32 %v2207, %v2238
        %v2244 = vadd.f32 %v2208, %v2238
        %v2245 = vadd.f32 %v2209, %v2238
        %v2246 = vadd.f32 %v2210, %v2238
        %v2247 = vadd.f32 %v2211, %v2238
        %v2248 = vadd.f32 %v2212, %v2238
        %v2249 = vadd.f32 %v2213, %v2238
        %v2250 = vadd.f32 %v2214, %v2238
        %v2251 = vadd.f32 %v2215, %v2238
        %v2252 = vadd.f32 %v2216, %v2238
        %v2253 = vadd.f32 %v2217, %v2238
        %v2254 = vadd.f32 %v2218, %v2238
        %v2255 = vadd.f32 %v2219, %v2238
        %v2256 = vadd.f32 %v2220, %v2238
        %v2257 = vadd.f32 %v2221, %v2238
        %v2258 = vadd.f32 %v2222, %v2238
        %v2259 = vadd.f32 %v2223, %v2238
        %v2260 = vadd.f32 %v2224, %v2238
        %v2261 = vadd.f32 %v2225, %v2238
        %v2262 = vadd.f32 %v2226, %v2238
        %v2263 = vadd.f32 %v2227, %v2238
        %v2264 = vadd.f32 %v2228, %v2238
        %v2265 = vadd.f32 %v2229, %v2238
        %v2266 = vadd.f32 %v2230, %v2238
        %v2267 = vadd.f32 %v2231, %v2238
        %v2268 = vadd.f32 %v2232, %v2238
        %v2269 = vadd.f32 %v2233, %v2238
        %v2270 = vadd.f32 %v2234, %v2238
        %v2271 = vmax.f32 %v2239, 0.0
        %v2272 = vmax.f32 %v2240, 0.0
        %v2273 = vmax.f32 %v2241, 0.0
        %v2274 = vmax.f32 %v2242, 0.0
        %v2275 = vmax.f32 %v2243, 0.0
        %v2276 = vmax.f32 %v2244, 0.0
        %v2277 = vmax.f32 %v2245, 0.0
        %v2278 = vmax.f32 %v2246, 0.0
        %v2279 = vmax.f32 %v2247, 0.0
        %v2280 = vmax.f32 %v2248, 0.0
        %v2281 = vmax.f32 %v2249, 0.0
        %v2282 = vmax.f32 %v2250, 0.0
        %v2283 = vmax.f32 %v2251, 0.0
        %v2284 = vmax.f32 %v2252, 0.0
        %v2285 = vmax.f32 %v2253, 0.0
        %v2286 = vmax.f32 %v2254, 0.0
        %v2287 = vmax.f32 %v2255, 0.0
        %v2288 = vmax.f32 %v2256, 0.0
        %v2289 = vmax.f32 %v2257, 0.0
        %v2290 = vmax.f32 %v2258, 0.0
        %v2291 = vmax.f32 %v2259, 0.0
        %v2292 = vmax.f32 %v2260, 0.0
        %v2293 = vmax.f32 %v2261, 0.0
        %v2294 = vmax.f32 %v2262, 0.0
        %v2295 = vmax.f32 %v2263, 0.0
        %v2296 = vmax.f32 %v2264, 0.0
        %v2297 = vmax.f32 %v2265, 0.0
        %v2298 = vmax.f32 %v2266, 0.0
        %v2299 = vmax.f32 %v2267, 0.0
        %v2300 = vmax.f32 %v2268, 0.0
        %v2301 = vmax.f32 %v2269, 0.0
        %v2302 = vmax.f32 %v2270, 0.0
        %v2303 = vpack.c.bf16 %v2272, %v2271
        %v2304 = vpack.c.bf16 %v2274, %v2273
        %v2305 = vpack.c.bf16 %v2276, %v2275
        %v2306 = vpack.c.bf16 %v2278, %v2277
        %v2307 = vpack.c.bf16 %v2280, %v2279
        %v2308 = vpack.c.bf16 %v2282, %v2281
        %v2309 = vpack.c.bf16 %v2284, %v2283
        %v2310 = vpack.c.bf16 %v2286, %v2285
        %v2311 = vpack.c.bf16 %v2288, %v2287
        %v2312 = vpack.c.bf16 %v2290, %v2289
        %v2313 = vpack.c.bf16 %v2292, %v2291
        %v2314 = vpack.c.bf16 %v2294, %v2293
        %v2315 = vpack.c.bf16 %v2296, %v2295
        %v2316 = vpack.c.bf16 %v2298, %v2297
        %v2317 = vpack.c.bf16 %v2300, %v2299
        %v2318 = vpack.c.bf16 %v2302, %v2301
        %v2335 = vunpack.c.l.b16 %v2303
        %v2336 = vunpack.c.h.b16 %v2303
        %v2337 = vunpack.c.l.b16 %v2304
        %v2338 = vunpack.c.h.b16 %v2304
        %v2339 = vunpack.c.l.b16 %v2305
        %v2340 = vunpack.c.h.b16 %v2305
        %v2341 = vunpack.c.l.b16 %v2306
        %v2342 = vunpack.c.h.b16 %v2306
        %v2343 = vunpack.c.l.b16 %v2307
        %v2344 = vunpack.c.h.b16 %v2307
        %v2345 = vunpack.c.l.b16 %v2308
        %v2346 = vunpack.c.h.b16 %v2308
        %v2347 = vunpack.c.l.b16 %v2309
        %v2348 = vunpack.c.h.b16 %v2309
        %v2349 = vunpack.c.l.b16 %v2310
        %v2350 = vunpack.c.h.b16 %v2310
        %v2351 = vunpack.c.l.b16 %v2311
        %v2352 = vunpack.c.h.b16 %v2311
        %v2353 = vunpack.c.l.b16 %v2312
        %v2354 = vunpack.c.h.b16 %v2312
        %v2355 = vunpack.c.l.b16 %v2313
        %v2356 = vunpack.c.h.b16 %v2313
        %v2357 = vunpack.c.l.b16 %v2314
        %v2358 = vunpack.c.h.b16 %v2314
        %v2359 = vunpack.c.l.b16 %v2315
        %v2360 = vunpack.c.h.b16 %v2315
        %v2361 = vunpack.c.l.b16 %v2316
        %v2362 = vunpack.c.h.b16 %v2316
        %v2363 = vunpack.c.l.b16 %v2317
        %v2364 = vunpack.c.h.b16 %v2317
        %v2365 = vunpack.c.l.b16 %v2318
        %v2366 = vunpack.c.h.b16 %v2318
        %v2367 = vpack.c.b16 %v2335, %v2335
        %v2368 = vpack.c.b16 %v2336, %v2336
        %v2369 = vpack.c.b16 %v2337, %v2337
        %v2370 = vpack.c.b16 %v2338, %v2338
        %v2371 = vpack.c.b16 %v2339, %v2339
        %v2372 = vpack.c.b16 %v2340, %v2340
        %v2373 = vpack.c.b16 %v2341, %v2341
        %v2374 = vpack.c.b16 %v2342, %v2342
        %v2375 = vpack.c.b16 %v2343, %v2343
        %v2376 = vpack.c.b16 %v2344, %v2344
        %v2377 = vpack.c.b16 %v2345, %v2345
        %v2378 = vpack.c.b16 %v2346, %v2346
        %v2379 = vpack.c.b16 %v2347, %v2347
        %v2380 = vpack.c.b16 %v2348, %v2348
        %v2381 = vpack.c.b16 %v2349, %v2349
        %v2382 = vpack.c.b16 %v2350, %v2350
        %v2383 = vpack.c.b16 %v2351, %v2351
        %v2384 = vpack.c.b16 %v2352, %v2352
        %v2385 = vpack.c.b16 %v2353, %v2353
        %v2386 = vpack.c.b16 %v2354, %v2354
        %v2387 = vpack.c.b16 %v2355, %v2355
        %v2388 = vpack.c.b16 %v2356, %v2356
        %v2389 = vpack.c.b16 %v2357, %v2357
        %v2390 = vpack.c.b16 %v2358, %v2358
        %v2391 = vpack.c.b16 %v2359, %v2359
        %v2392 = vpack.c.b16 %v2360, %v2360
        %v2393 = vpack.c.b16 %v2361, %v2361
        %v2394 = vpack.c.b16 %v2362, %v2362
        %v2395 = vpack.c.b16 %v2363, %v2363
        %v2396 = vpack.c.b16 %v2364, %v2364
        %v2397 = vpack.c.b16 %v2365, %v2365
        %v2398 = vpack.c.b16 %v2366, %v2366
        %2431 = vst [vmem:[%s312] sm:$0xf] %v2367
        %2432 = vst [vmem:[%s312 + $0x4] sm:$0xf] %v2368
        %2433 = vst [vmem:[%s312 + $0x8] sm:$0xf] %v2369
        %2434 = vst [vmem:[%s312 + $0xc] sm:$0xf] %v2370
        %2435 = vst [vmem:[%s312 + $0x10] sm:$0xf] %v2371
        %2436 = vst [vmem:[%s312 + $0x14] sm:$0xf] %v2372
        %2437 = vst [vmem:[%s312 + $0x18] sm:$0xf] %v2373
        %2438 = vst [vmem:[%s312 + $0x1c] sm:$0xf] %v2374
        %2439 = vst [vmem:[%s312 + $0x20] sm:$0xf] %v2375
        %2440 = vst [vmem:[%s312 + $0x24] sm:$0xf] %v2376
        %2441 = vst [vmem:[%s312 + $0x28] sm:$0xf] %v2377
        %2442 = vst [vmem:[%s312 + $0x2c] sm:$0xf] %v2378
        %2443 = vst [vmem:[%s312 + $0x30] sm:$0xf] %v2379
        %2444 = vst [vmem:[%s312 + $0x34] sm:$0xf] %v2380
        %2445 = vst [vmem:[%s312 + $0x38] sm:$0xf] %v2381
        %2446 = vst [vmem:[%s312 + $0x3c] sm:$0xf] %v2382
        %2447 = vst [vmem:[%s312 + $0x40] sm:$0xf] %v2383
        %2448 = vst [vmem:[%s312 + $0x44] sm:$0xf] %v2384
        %2449 = vst [vmem:[%s312 + $0x48] sm:$0xf] %v2385
        %2450 = vst [vmem:[%s312 + $0x4c] sm:$0xf] %v2386
        %2451 = vst [vmem:[%s312 + $0x50] sm:$0xf] %v2387
        %2452 = vst [vmem:[%s312 + $0x54] sm:$0xf] %v2388
        %2453 = vst [vmem:[%s312 + $0x58] sm:$0xf] %v2389
        %2454 = vst [vmem:[%s312 + $0x5c] sm:$0xf] %v2390
        %2455 = vst [vmem:[%s312 + $0x60] sm:$0xf] %v2391
        %2456 = vst [vmem:[%s312 + $0x64] sm:$0xf] %v2392
        %2457 = vst [vmem:[%s312 + $0x68] sm:$0xf] %v2393
        %2458 = vst [vmem:[%s312 + $0x6c] sm:$0xf] %v2394
        %2459 = vst [vmem:[%s312 + $0x70] sm:$0xf] %v2395
        %2460 = vst [vmem:[%s312 + $0x74] sm:$0xf] %v2396
        %2461 = vst [vmem:[%s312 + $0x78] sm:$0xf] %v2397
        %2462 = vst [vmem:[%s312 + $0x7c] sm:$0xf] %v2398
        %s2463 = sand.u32 %s186, 1
        %s2464 = scalar_lea.sflag [#allocation3], %s2463
        %s2465 = sand.u32 %s186, 1
        %s2466 = smul.addr %s2465, 128
        %s2467 = scalar_lea.vmem [#allocation2], %s2466
        // Predicated region
        $region49: #{tpu_custom_call.1} parent=47 // pred_check
          %p2468 = pneg %p196
        $region50: #{tpu_custom_call.1} parent=47 // pred_check_branch
          %2470 = sbr.rel (%p2468) target = $region52
        $region51: #{tpu_custom_call.1} parent=47 // pred_region
          %s2471 = smul.u32 32, %s21
          %s2472 = ssub.s32 125, %s2471
          %p2473 = scmp.lt.s32.totalorder %s2472, 32
          %s2474 = scalar_select %p2473, %s2472, 32
          %s2475 = smul.u32 64, %s2474
          %s2477 = ssub.s32 2048, %s2475
          %2478 = vsyncadd %s2464, %s2477
          %p2479 = scmp.ne.s32.totalorder 0, %s2475
          %s2480 = smul.addr %s2471, 64
          %s2481 = scalar_lea.hbm %s7, %s2480
          %s2482 = smul.u32 4, %s2474
          %s2483 = sshll.u32 %s2467, 4
          %s2484 = int_to_ptr.vmem [resolvable:$true] %s2483
          %s2485 = sshll.u32 %s2482, 4
          %2489 = dma.vmem_to_hbm [thread:$0]  (%p2479), %s2484, %s2485, %s2481, %s2464, 64, 64, 4
        $region52: #{tpu_custom_call.1} parent=47 // pred_fallthru
          _
      $region48: #{tpu_custom_call.1} parent=5 // pred_fallthru
        _
      %p2490 = scmp.le.s32.totalorder 2, %s16
      // Predicated region
      $region53: #{tpu_custom_call.1} parent=5 // pred_check
        %p2491 = pneg %p2490
      $region54: #{tpu_custom_call.1} parent=5 // pred_check_branch
        %2493 = sbr.rel (%p2491) target = $region56
      $region55: #{tpu_custom_call.1} parent=5 // pred_region
        %s2494 = ssub.s32 %s16, 2
        // Predicated region
        $region57: #{tpu_custom_call.1} parent=55 // pred_check
          %p2495 = pneg %p202
        $region58: #{tpu_custom_call.1} parent=55 // pred_check_branch
          %2497 = sbr.rel (%p2495) target = $region60
        $region59: #{tpu_custom_call.1} parent=55 // pred_region
          %s2498 = sand.u32 %s187, 1
          %s2499 = scalar_lea.sflag [#allocation3], %s2498
          %s2500 = sand.u32 %s187, 1
          %s2501 = smul.addr %s2500, 128
          %s2502 = scalar_lea.vmem [#allocation2], %s2501
          %2503 = dma.done %s2499, 2048
        $region60: #{tpu_custom_call.1} parent=55 // pred_fallthru
          _
      $region56: #{tpu_custom_call.1} parent=5 // pred_fallthru
        _
    $region6: #{tpu_custom_call.1} parent=1 // loop_footer
      %s20 = sadd.s32 1, %s16
    $region7: #{tpu_custom_call.1} parent=1 // loop_footer_branch
      %15 = sbr.rel target = $region3
    $region8: #{tpu_custom_call.1} parent=1 // loop_exit
      _
    %2504 = vsyncpa [#allocation3], 1
    %s2505 = scalar_lea.sflag [#allocation3], 1
    %2506 = vsyncpa %s2505, 1

</llo_original>
